<compile_context>
chip_gen: v7x
topology: tpu7x:2x2x1
jax: 0.10.0
libtpu: 0.0.40
codegen_flags: <defaults>
</compile_context>

<pallas_src>
import math

import jax
import jax.numpy as jnp
from jax.experimental import pallas as pl
from jax.experimental.pallas import tpu as pltpu


def _round_up(x, m):
    return (x + m - 1) // m * m


def _conv_stats_kernel(p_ref, w_ref, conv_ref, sum_ref, ssq_ref, acc_ref):
    """Pass 1: im2col'd conv as a K-tiled MXU matmul + per-row-tile channel stats.

    p_ref:    (tile1, tk)        bf16 patch tile
    w_ref:    (tk, Cp)           bf16 weight tile
    conv_ref: (tile1, Cp)        bf16 conv output tile (resident across k)
    sum_ref:  (1, 1, Cp)         f32 per-row-tile channel sum
    ssq_ref:  (1, 1, Cp)         f32 per-row-tile channel sum of squares
    acc_ref:  (tile1, Cp)        f32 VMEM accumulator scratch
    """
    k = pl.program_id(1)

    @pl.when(k == 0)
    def _():
        acc_ref[...] = jnp.zeros_like(acc_ref)

    acc_ref[...] += jnp.dot(p_ref[...], w_ref[...],
                            preferred_element_type=jnp.float32)

    @pl.when(k == pl.num_programs(1) - 1)
    def _():
        acc = acc_ref[...]
        conv_ref[...] = acc.astype(conv_ref.dtype)
        # Stats in f32 from the f32 accumulator; zero-padded rows / K columns
        # contribute exactly 0 so no masking is needed.
        sum_ref[...] = jnp.sum(acc, axis=0, keepdims=True)[None]
        ssq_ref[...] = jnp.sum(acc * acc, axis=0, keepdims=True)[None]


def _bn_silu_kernel(conv_ref, scale_ref, shift_ref, o_ref):
    """Pass 2: y = conv*scale + shift (affine BN), then SiLU, one bf16 store."""
    y = conv_ref[...].astype(jnp.float32) * scale_ref[...] + shift_ref[...]
    sig = pl.reciprocal(1.0 + jnp.exp(-y), approx=True)   # sigmoid on the EUP
    o_ref[...] = (y * sig).astype(o_ref.dtype)


def dconv_forward(x_nchw, weight_oihw, gamma, beta, *, stride=1, padding=0,
                  dilation=1, eps=1e-3, tile_rows=512, tile_rows_bn=2048,
                  tile_k=1024):
    """Equivalent of DConv.forward (train-mode BN) for NCHW input / OIHW weight."""
    N, Cin, H, W = x_nchw.shape
    Cout, _, KH, KW = weight_oihw.shape
    Ho = (H + 2 * padding - dilation * (KH - 1) - 1) // stride + 1
    Wo = (W + 2 * padding - dilation * (KW - 1) - 1) // stride + 1
    R = N * Ho * Wo
    K = KH * KW * Cin

    # Lane/tile friendly padded sizes.
    Cp = _round_up(Cout, 128)                       # lane-dense output channels
    Kp = _round_up(K, 128)                          # lane-dense contraction dim
    tk = Kp if Kp <= tile_k else tile_k             # K tile (grid axis)
    Kpp = _round_up(Kp, tk)
    num_k = Kpp // tk

    tile1 = _round_up(max(8, min(tile_rows, R)), 8)             # pass-1 row tile
    k2 = max(1, min(max(1, tile_rows_bn // tile1),
                    (R + tile1 - 1) // tile1))
    tile2 = tile1 * k2                                          # pass-2 row tile
    Rp = _round_up(R, tile2)
    num_tiles1 = Rp // tile1
    num_tiles2 = Rp // tile2

    # --- wrapper glue (plain XLA, bf16-first to halve glue traffic) ----------
    x = jnp.transpose(x_nchw, (0, 2, 3, 1)).astype(jnp.bfloat16)   # NHWC bf16
    x = jnp.pad(x, ((0, 0), (padding, padding), (padding, padding), (0, 0)))
    taps = []
    for kh in range(KH):
        for kw in range(KW):
            h0 = kh * dilation
            w0 = kw * dilation
            taps.append(x[:, h0:h0 + (Ho - 1) * stride + 1:stride,
                          w0:w0 + (Wo - 1) * stride + 1:stride, :])
    patches = jnp.concatenate(taps, axis=-1).reshape(R, K)         # (R, K) bf16
    patches = jnp.pad(patches, ((0, Rp - R), (0, Kpp - K)))

    w = jnp.transpose(weight_oihw, (2, 3, 1, 0)).reshape(K, Cout)
    w = jnp.pad(w.astype(jnp.bfloat16), ((0, Kpp - K), (0, Cp - Cout)))

    # Device-aware VMEM budget (v5e/v6e: 128 MiB physical, v7x: 64 MiB per TC).
    try:
        vmem_cap = int(pltpu.get_tpu_info().vmem_capacity_bytes)
    except Exception:
        vmem_cap = 64 * 1024 * 1024
    vmem_limit = int(min(100 * 1024 * 1024,
                         max(32 * 1024 * 1024, 0.7 * vmem_cap)))

    cparams1 = pltpu.CompilerParams(
        dimension_semantics=("parallel", "arbitrary"),
        vmem_limit_bytes=vmem_limit)
    cparams2 = pltpu.CompilerParams(
        dimension_semantics=("parallel",),
        vmem_limit_bytes=vmem_limit)

    # --- pass 1: conv matmul (K-tiled, f32 acc) + per-tile channel stats -----
    cost1 = pl.CostEstimate(
        flops=2 * Rp * Kpp * Cp,
        transcendentals=0,
        bytes_accessed=(Rp * Kpp * 2 + num_tiles1 * Kpp * Cp * 2
                        + Rp * Cp * 2 + 2 * num_tiles1 * Cp * 4))

    conv_out, psum, pssq = pl.pallas_call(
        _conv_stats_kernel,
        grid=(num_tiles1, num_k),
        out_shape=(
            jax.ShapeDtypeStruct((Rp, Cp), jnp.bfloat16),
            jax.ShapeDtypeStruct((num_tiles1, 1, Cp), jnp.float32),
            jax.ShapeDtypeStruct((num_tiles1, 1, Cp), jnp.float32),
        ),
        in_specs=[
            pl.BlockSpec((tile1, tk), lambda i, k: (i, k)),
            pl.BlockSpec((tk, Cp), lambda i, k: (k, 0)),
        ],
        out_specs=(
            pl.BlockSpec((tile1, Cp), lambda i, k: (i, 0)),
            pl.BlockSpec((1, 1, Cp), lambda i, k: (i, 0, 0)),
            pl.BlockSpec((1, 1, Cp), lambda i, k: (i, 0, 0)),
        ),
        scratch_shapes=[pltpu.VMEM((tile1, Cp), jnp.float32)],
        compiler_params=cparams1,
        cost_estimate=cost1,
    )(patches, w)

    # --- combine partial stats (tiny, f32) ------------------------------------
    total_sum = jnp.sum(psum[:, 0, :], axis=0)        # (Cp,)
    total_ssq = jnp.sum(pssq[:, 0, :], axis=0)        # (Cp,)
    mean = total_sum / R                              # biased batch stats
    # TODO(synk): E[x^2]-mean^2 can cancel in f32 when |mean| >> std; a Welford
    # / shifted-sum combine would be more robust for extreme activation scales.
    var = jnp.maximum(total_ssq / R - mean * mean, 0.0)
    inv_std = jax.lax.rsqrt(var + eps)
    gamma_p = jnp.pad(gamma.astype(jnp.float32), (0, Cp - Cout), constant_values=1.0)
    beta_p = jnp.pad(beta.astype(jnp.float32), (0, Cp - Cout))
    scale = (gamma_p * inv_std).reshape(1, Cp)
    shift = (beta_p - mean * gamma_p * inv_std).reshape(1, Cp)

    # --- pass 2: normalize + SiLU (HBM-bound; big tiles; aliased bf16 output) --
    cost2 = pl.CostEstimate(
        flops=6 * Rp * Cp,
        transcendentals=Rp * Cp,
        bytes_accessed=2 * Rp * Cp * 2 + 2 * Cp * 4)

    out_flat = pl.pallas_call(
        _bn_silu_kernel,
        grid=(num_tiles2,),
        out_shape=jax.ShapeDtypeStruct((Rp, Cp), jnp.bfloat16),
        in_specs=[
            pl.BlockSpec((tile2, Cp), lambda i: (i, 0)),
            pl.BlockSpec((1, Cp), lambda i: (0, 0)),
            pl.BlockSpec((1, Cp), lambda i: (0, 0)),
        ],
        out_specs=pl.BlockSpec((tile2, Cp), lambda i: (i, 0)),
        input_output_aliases={0: 0},   # reuse the conv_out HBM buffer
        compiler_params=cparams2,
        cost_estimate=cost2,
    )(conv_out, scale, shift)

    # Strip padding and go back to NCHW (wrapper glue).
    out = out_flat[:R, :Cout].astype(jnp.float32).reshape(N, Ho, Wo, Cout)
    return jnp.transpose(out, (0, 3, 1, 2))


def ref_dconv(x_nchw, weight_oihw, gamma, beta, stride, padding, dilation, eps):
    """Pure-JAX reference matching PyTorch DConv.forward (module in train mode)."""
    conv = jax.lax.conv_general_dilated(
        x_nchw, weight_oihw,
        window_strides=(stride, stride),
        padding=((padding, padding), (padding, padding)),
        rhs_dilation=(dilation, dilation),
        dimension_numbers=('NCHW', 'OIHW', 'NCHW'))
    mean = jnp.mean(conv, axis=(0, 2, 3), keepdims=True)
    var = jnp.mean((conv - mean) ** 2, axis=(0, 2, 3), keepdims=True)
    y = (conv - mean) * jax.lax.rsqrt(var + eps)
    y = y * gamma.reshape(1, -1, 1, 1) + beta.reshape(1, -1, 1, 1)
    return y * jax.nn.sigmoid(y)


if __name__ == "__main__":
    key = jax.random.PRNGKey(0)
    k1, k2, k3, k4 = jax.random.split(key, 4)

    # Small shapes consistent with the module: DConv(in=4, out=8, k=3, s=1, p=1)
    N, Cin, H, W = 2, 4, 16, 16
    Cout, KH, KW = 8, 3, 3
    stride, padding, dilation = 1, 1, 1
    eps = 1e-3    # matches nn.BatchNorm2d(out_channels, eps=0.001)

    x = jax.random.normal(k1, (N, Cin, H, W), jnp.float32)

    # Deterministic parameter init (Conv2d-style uniform bound; BN gamma~1, beta~0).
    bound = 1.0 / math.sqrt(Cin * KH * KW)
    weight = jax.random.uniform(k2, (Cout, Cin, KH, KW), jnp.float32, -bound, bound)
    gamma = 1.0 + 0.1 * jax.random.normal(k3, (Cout,), jnp.float32)
    beta = 0.1 * jax.random.normal(k4, (Cout,), jnp.float32)
    # TODO(synk): BatchNorm running_mean/running_var momentum updates are a
    # training-time side effect that does not affect this forward output; not replicated.

    fwd = jax.jit(lambda x_, w_, g_, b_: dconv_forward(
        x_, w_, g_, b_, stride=stride, padding=padding, dilation=dilation, eps=eps))
    out = jax.block_until_ready(fwd(x, weight, gamma, beta))

    ref = ref_dconv(x, weight, gamma, beta, stride, padding, dilation, eps)
    assert out.shape == ref.shape == (N, Cout, H, W)
    # bf16 matmul inputs + bf16 conv intermediate + bf16 final store (f32 stats):
    # expected max abs error O(1e-2) for O(1) activations.
    err = float(jnp.max(jnp.abs(out - ref)))
    assert err < 5e-2, f"max abs error too large: {err}"
    print("KERNEL_OK")
</pallas_src>

<mosaic_0001>
module attributes {stable_mosaic.version = 11 : i64} {
  func.func @_conv_stats_kernel(%arg0: i32, %arg1: i32, %arg2: memref<512x128xbf16, #tpu.memory_space<vmem>>, %arg3: memref<128x128xbf16, #tpu.memory_space<vmem>>, %arg4: memref<512x128xbf16, #tpu.memory_space<vmem>>, %arg5: memref<1x1x128xf32, #tpu.memory_space<vmem>>, %arg6: memref<1x1x128xf32, #tpu.memory_space<vmem>>, %arg7: memref<512x128xf32, #tpu.memory_space<vmem>>) attributes {dimension_semantics = [#tpu.dimension_semantics<parallel>, #tpu.dimension_semantics<arbitrary>], iteration_bounds = array<i64: 1, 1>, scalar_prefetch = 0 : i64, scratch_operands = 1 : i64, tpu.core_type = #tpu.core_type<tc>, window_params = [{transform_indices = @transform_0, window_bounds = array<i64: 512, 128>}, {transform_indices = @transform_1, window_bounds = array<i64: 128, 128>}, {transform_indices = @transform_2, window_bounds = array<i64: 512, 128>}, {transform_indices = @transform_3, window_bounds = array<i64: 1, 1, 128>}, {transform_indices = @transform_4, window_bounds = array<i64: 1, 1, 128>}]} {
    %c0_i32 = arith.constant 0 : i32
    %0 = arith.cmpi eq, %arg1, %c0_i32 : i32
    %1 = arith.extui %0 : i1 to i32
    %c0_i32_0 = arith.constant 0 : i32
    %2 = arith.cmpi ne, %1, %c0_i32_0 : i32
    scf.if %2 {
      %cst_10 = arith.constant 0.000000e+00 : f32
      %12 = vector.broadcast %cst_10 : f32 to vector<512x128xf32>
      %c0_11 = arith.constant 0 : index
      %c0_12 = arith.constant 0 : index
      %13 = vector.load %arg7[%c0_11, %c0_12] : memref<512x128xf32, #tpu.memory_space<vmem>>, vector<512x128xf32>
      tpu.vector_store %arg7[%c0_11, %c0_12], %12 {strides = array<i32>} : memref<512x128xf32, #tpu.memory_space<vmem>>, vector<512x128xf32>,
    } else {
    }
    %c0 = arith.constant 0 : index
    %c0_1 = arith.constant 0 : index
    %3 = vector.load %arg7[%c0, %c0_1] : memref<512x128xf32, #tpu.memory_space<vmem>>, vector<512x128xf32>
    %c0_2 = arith.constant 0 : index
    %c0_3 = arith.constant 0 : index
    %4 = vector.load %arg2[%c0_2, %c0_3] : memref<512x128xbf16, #tpu.memory_space<vmem>>, vector<512x128xbf16>
    %c0_4 = arith.constant 0 : index
    %c0_5 = arith.constant 0 : index
    %5 = vector.load %arg3[%c0_4, %c0_5] : memref<128x128xbf16, #tpu.memory_space<vmem>>, vector<128x128xbf16>
    %cst = arith.constant dense<0.000000e+00> : vector<512x128xf32>
    %6 = tpu.matmul %4, %5, %cst {dimension_numbers = #tpu.dot_dimension_numbers<[1], [0], [0], [1], [0, 0, 1, 1], [], []>} : vector<512x128xbf16>, vector<128x128xbf16>, vector<512x128xf32> -> vector<512x128xf32>
    %7 = arith.addf %3, %6 : vector<512x128xf32>
    %c0_6 = arith.constant 0 : index
    %c0_7 = arith.constant 0 : index
    %8 = vector.load %arg7[%c0_6, %c0_7] : memref<512x128xf32, #tpu.memory_space<vmem>>, vector<512x128xf32>
    tpu.vector_store %arg7[%c0_6, %c0_7], %7 {strides = array<i32>} : memref<512x128xf32, #tpu.memory_space<vmem>>, vector<512x128xf32>,
    %c0_i32_8 = arith.constant 0 : i32
    %9 = arith.cmpi eq, %arg1, %c0_i32_8 : i32
    %10 = arith.extui %9 : i1 to i32
    %c0_i32_9 = arith.constant 0 : i32
    %11 = arith.cmpi ne, %10, %c0_i32_9 : i32
    scf.if %11 {
      %c0_10 = arith.constant 0 : index
      %c0_11 = arith.constant 0 : index
      %12 = vector.load %arg7[%c0_10, %c0_11] : memref<512x128xf32, #tpu.memory_space<vmem>>, vector<512x128xf32>
      %13 = arith.truncf %12 : vector<512x128xf32> to vector<512x128xbf16>
      %c0_12 = arith.constant 0 : index
      %c0_13 = arith.constant 0 : index
      %14 = vector.load %arg4[%c0_12, %c0_13] : memref<512x128xbf16, #tpu.memory_space<vmem>>, vector<512x128xbf16>
      tpu.vector_store %arg4[%c0_12, %c0_13], %13 {strides = array<i32>} : memref<512x128xbf16, #tpu.memory_space<vmem>>, vector<512x128xbf16>,
      %cst_14 = arith.constant dense<0.000000e+00> : vector<128xf32>
      %15 = vector.multi_reduction <add>, %12, %cst_14 [0] : vector<512x128xf32> to vector<128xf32>
      %16 = vector.shape_cast %15 : vector<128xf32> to vector<1x128xf32>
      %17 = vector.shape_cast %16 : vector<1x128xf32> to vector<1x1x128xf32>
      %c0_15 = arith.constant 0 : index
      %c0_16 = arith.constant 0 : index
      %c0_17 = arith.constant 0 : index
      %18 = vector.load %arg5[%c0_15, %c0_16, %c0_17] : memref<1x1x128xf32, #tpu.memory_space<vmem>>, vector<1x1x128xf32>
      tpu.vector_store %arg5[%c0_15, %c0_16, %c0_17], %17 {strides = array<i32>} : memref<1x1x128xf32, #tpu.memory_space<vmem>>, vector<1x1x128xf32>,
      %19 = arith.mulf %12, %12 : vector<512x128xf32>
      %cst_18 = arith.constant dense<0.000000e+00> : vector<128xf32>
      %20 = vector.multi_reduction <add>, %19, %cst_18 [0] : vector<512x128xf32> to vector<128xf32>
      %21 = vector.shape_cast %20 : vector<128xf32> to vector<1x128xf32>
      %22 = vector.shape_cast %21 : vector<1x128xf32> to vector<1x1x128xf32>
      %c0_19 = arith.constant 0 : index
      %c0_20 = arith.constant 0 : index
      %c0_21 = arith.constant 0 : index
      %23 = vector.load %arg6[%c0_19, %c0_20, %c0_21] : memref<1x1x128xf32, #tpu.memory_space<vmem>>, vector<1x1x128xf32>
      tpu.vector_store %arg6[%c0_19, %c0_20, %c0_21], %22 {strides = array<i32>} : memref<1x1x128xf32, #tpu.memory_space<vmem>>, vector<1x1x128xf32>,
    } else {
    }
    return
  }
  func.func @transform_0(%arg0: i32, %arg1: i32) -> (i32, i32) {
    %c0_i32 = arith.constant 0 : i32
    return %arg0, %arg1 : i32, i32
  }
  func.func @transform_1(%arg0: i32, %arg1: i32) -> (i32, i32) {
    %c0_i32 = arith.constant 0 : i32
    %c0_i32_0 = arith.constant 0 : i32
    return %arg1, %c0_i32 : i32, i32
  }
  func.func @transform_2(%arg0: i32, %arg1: i32) -> (i32, i32) {
    %c0_i32 = arith.constant 0 : i32
    %c0_i32_0 = arith.constant 0 : i32
    return %arg0, %c0_i32 : i32, i32
  }
  func.func @transform_3(%arg0: i32, %arg1: i32) -> (i32, i32, i32) {
    %c0_i32 = arith.constant 0 : i32
    %c0_i32_0 = arith.constant 0 : i32
    %c0_i32_1 = arith.constant 0 : i32
    return %arg0, %c0_i32, %c0_i32_0 : i32, i32, i32
  }
  func.func @transform_4(%arg0: i32, %arg1: i32) -> (i32, i32, i32) {
    %c0_i32 = arith.constant 0 : i32
    %c0_i32_0 = arith.constant 0 : i32
    %c0_i32_1 = arith.constant 0 : i32
    return %arg0, %c0_i32, %c0_i32_0 : i32, i32, i32
  }
}

module attributes {stable_mosaic.version = 11 : i64} {
  func.func @_bn_silu_kernel(%arg0: i32, %arg1: memref<512x128xbf16, #tpu.memory_space<vmem>>, %arg2: memref<1x128xf32, #tpu.memory_space<vmem>>, %arg3: memref<1x128xf32, #tpu.memory_space<vmem>>, %arg4: memref<512x128xbf16, #tpu.memory_space<vmem>>) attributes {dimension_semantics = [#tpu.dimension_semantics<parallel>], iteration_bounds = array<i64: 1>, scalar_prefetch = 0 : i64, scratch_operands = 0 : i64, tpu.core_type = #tpu.core_type<tc>, window_params = [{transform_indices = @transform_0, window_bounds = array<i64: 512, 128>}, {pipeline_mode = #tpu.pipeline_mode<synchronous>, transform_indices = @transform_1, window_bounds = array<i64: 1, 128>}, {pipeline_mode = #tpu.pipeline_mode<synchronous>, transform_indices = @transform_2, window_bounds = array<i64: 1, 128>}, {transform_indices = @transform_3, window_bounds = array<i64: 512, 128>}]} {
    %c0 = arith.constant 0 : index
    %c0_0 = arith.constant 0 : index
    %0 = vector.load %arg1[%c0, %c0_0] : memref<512x128xbf16, #tpu.memory_space<vmem>>, vector<512x128xbf16>
    %1 = arith.extf %0 : vector<512x128xbf16> to vector<512x128xf32>
    %c0_1 = arith.constant 0 : index
    %c0_2 = arith.constant 0 : index
    %2 = vector.load %arg2[%c0_1, %c0_2] : memref<1x128xf32, #tpu.memory_space<vmem>>, vector<1x128xf32>
    %3 = vector.broadcast %2 : vector<1x128xf32> to vector<512x128xf32>
    %4 = arith.mulf %1, %3 : vector<512x128xf32>
    %c0_3 = arith.constant 0 : index
    %c0_4 = arith.constant 0 : index
    %5 = vector.load %arg3[%c0_3, %c0_4] : memref<1x128xf32, #tpu.memory_space<vmem>>, vector<1x128xf32>
    %6 = vector.broadcast %5 : vector<1x128xf32> to vector<512x128xf32>
    %7 = arith.addf %4, %6 : vector<512x128xf32>
    %cst = arith.constant 0.000000e+00 : f32
    %8 = vector.broadcast %cst : f32 to vector<512x128xf32>
    %9 = arith.subf %8, %7 : vector<512x128xf32>
    %10 = math.exp %9 : vector<512x128xf32>
    %cst_5 = arith.constant 1.000000e+00 : f32
    %11 = vector.broadcast %cst_5 : f32 to vector<512x128xf32>
    %12 = arith.addf %11, %10 : vector<512x128xf32>
    %13 = tpu.reciprocal %12 {approx = true} : vector<512x128xf32> -> vector<512x128xf32>
    %14 = arith.mulf %7, %13 : vector<512x128xf32>
    %15 = arith.truncf %14 : vector<512x128xf32> to vector<512x128xbf16>
    %c0_6 = arith.constant 0 : index
    %c0_7 = arith.constant 0 : index
    %16 = vector.load %arg4[%c0_6, %c0_7] : memref<512x128xbf16, #tpu.memory_space<vmem>>, vector<512x128xbf16>
    tpu.vector_store %arg4[%c0_6, %c0_7], %15 {strides = array<i32>} : memref<512x128xbf16, #tpu.memory_space<vmem>>, vector<512x128xbf16>,
    return
  }
  func.func @transform_0(%arg0: i32) -> (i32, i32) {
    %c0_i32 = arith.constant 0 : i32
    %c0_i32_0 = arith.constant 0 : i32
    return %arg0, %c0_i32 : i32, i32
  }
  func.func @transform_1(%arg0: i32) -> (i32, i32) {
    %c0_i32 = arith.constant 0 : i32
    %c0_i32_0 = arith.constant 0 : i32
    %c0_i32_1 = arith.constant 0 : i32
    return %c0_i32, %c0_i32_0 : i32, i32
  }
  func.func @transform_2(%arg0: i32) -> (i32, i32) {
    %c0_i32 = arith.constant 0 : i32
    %c0_i32_0 = arith.constant 0 : i32
    %c0_i32_1 = arith.constant 0 : i32
    return %c0_i32, %c0_i32_0 : i32, i32
  }
  func.func @transform_3(%arg0: i32) -> (i32, i32) {
    %c0_i32 = arith.constant 0 : i32
    %c0_i32_0 = arith.constant 0 : i32
    return %arg0, %c0_i32 : i32, i32
  }
}

</mosaic_0001>

<llo_original>
// kernel: _lambda_.3
$region0: #{_lambda_.3}
  #allocation0 [shape = 'u32[]', space=smem, size = 0x4, offset = 0x4, fixed_abs, tag = 'smem constant byte address 0x4 - core index']
  #allocation1 [shape = 'u32[144,128]{1,0:T(1,128)}', space=vmem, size = 0x12000, scoped, tag = 'internal scratch']
  %s0 = inlined_call_operand.vmem [shape: bf16[512,128], index: 0, kind: input, shape index: {}, may-alias: {0,3}]
  %s1 = inlined_call_operand.vmem [shape: f32[1,128], index: 1, kind: input, shape index: {}]
  %s2 = inlined_call_operand.vmem [shape: f32[1,128], index: 2, kind: input, shape index: {}]
  %s3 = inlined_call_operand.vmem [shape: bf16[512,128], index: 3, kind: output, shape index: {}, may-alias: {0,3}]
  %s4 = sld [smem:[#allocation0]]
  $region22: #{_lambda_.3} parent=0
    _
  %s6 = ssub.s32 1, %s4
  %s7 = scalar_select 0, %s6, %s4
  // Predicated region
  $region2: #{_lambda_.3} parent=0 // pred_check
    _
  $region3: #{_lambda_.3} parent=0 // pred_check_branch
    %9 = sbr.rel (0) target = $region5
  $region4: #{_lambda_.3} parent=0 // pred_region
    _
  $region5: #{_lambda_.3} parent=0 // pred_fallthru
    _
  // Predicated region
  $region6: #{_lambda_.3} parent=0 // pred_check
    _
  $region7: #{_lambda_.3} parent=0 // pred_check_branch
    %11 = sbr.rel (0) target = $region9
  $region8: #{_lambda_.3} parent=0 // pred_region
    _
  $region9: #{_lambda_.3} parent=0 // pred_fallthru
    _
  // Predicated region
  $region10: #{_lambda_.3} parent=0 // pred_check
    _
  $region11: #{_lambda_.3} parent=0 // pred_check_branch
    %13 = sbr.rel (0) target = $region13
  $region12: #{_lambda_.3} parent=0 // pred_region
    _
  $region13: #{_lambda_.3} parent=0 // pred_fallthru
    _
  %v14 = vld [vmem:[%s0] sm:$0xf]
  %v15 = vld [vmem:[%s0 + $0x4] sm:$0xf]
  %v16 = vld [vmem:[%s0 + $0x8] sm:$0xf]
  %v17 = vld [vmem:[%s0 + $0xc] sm:$0xf]
  %v18 = vld [vmem:[%s0 + $0x10] sm:$0xf]
  %v19 = vld [vmem:[%s0 + $0x14] sm:$0xf]
  %v20 = vld [vmem:[%s0 + $0x18] sm:$0xf]
  %v21 = vld [vmem:[%s0 + $0x1c] sm:$0xf]
  %v22 = vld [vmem:[%s0 + $0x20] sm:$0xf]
  %v23 = vld [vmem:[%s0 + $0x24] sm:$0xf]
  %v24 = vld [vmem:[%s0 + $0x28] sm:$0xf]
  %v25 = vld [vmem:[%s0 + $0x2c] sm:$0xf]
  %v26 = vld [vmem:[%s0 + $0x30] sm:$0xf]
  %v27 = vld [vmem:[%s0 + $0x34] sm:$0xf]
  %v28 = vld [vmem:[%s0 + $0x38] sm:$0xf]
  %v29 = vld [vmem:[%s0 + $0x3c] sm:$0xf]
  %v30 = vld [vmem:[%s0 + $0x40] sm:$0xf]
  %v31 = vld [vmem:[%s0 + $0x44] sm:$0xf]
  %v32 = vld [vmem:[%s0 + $0x48] sm:$0xf]
  %v33 = vld [vmem:[%s0 + $0x4c] sm:$0xf]
  %v34 = vld [vmem:[%s0 + $0x50] sm:$0xf]
  %v35 = vld [vmem:[%s0 + $0x54] sm:$0xf]
  %v36 = vld [vmem:[%s0 + $0x58] sm:$0xf]
  %v37 = vld [vmem:[%s0 + $0x5c] sm:$0xf]
  %v38 = vld [vmem:[%s0 + $0x60] sm:$0xf]
  %v39 = vld [vmem:[%s0 + $0x64] sm:$0xf]
  %v40 = vld [vmem:[%s0 + $0x68] sm:$0xf]
  %v41 = vld [vmem:[%s0 + $0x6c] sm:$0xf]
  %v42 = vld [vmem:[%s0 + $0x70] sm:$0xf]
  %v43 = vld [vmem:[%s0 + $0x74] sm:$0xf]
  %v44 = vld [vmem:[%s0 + $0x78] sm:$0xf]
  %v45 = vld [vmem:[%s0 + $0x7c] sm:$0xf]
  %v46 = vld [vmem:[%s0 + $0x80] sm:$0xf]
  %v47 = vld [vmem:[%s0 + $0x84] sm:$0xf]
  %v48 = vld [vmem:[%s0 + $0x88] sm:$0xf]
  %v49 = vld [vmem:[%s0 + $0x8c] sm:$0xf]
  %v50 = vld [vmem:[%s0 + $0x90] sm:$0xf]
  %v51 = vld [vmem:[%s0 + $0x94] sm:$0xf]
  %v52 = vld [vmem:[%s0 + $0x98] sm:$0xf]
  %v53 = vld [vmem:[%s0 + $0x9c] sm:$0xf]
  %v54 = vld [vmem:[%s0 + $0xa0] sm:$0xf]
  %v55 = vld [vmem:[%s0 + $0xa4] sm:$0xf]
  %v56 = vld [vmem:[%s0 + $0xa8] sm:$0xf]
  %v57 = vld [vmem:[%s0 + $0xac] sm:$0xf]
  %v58 = vld [vmem:[%s0 + $0xb0] sm:$0xf]
  %v59 = vld [vmem:[%s0 + $0xb4] sm:$0xf]
  %v60 = vld [vmem:[%s0 + $0xb8] sm:$0xf]
  %v61 = vld [vmem:[%s0 + $0xbc] sm:$0xf]
  %v62 = vld [vmem:[%s0 + $0xc0] sm:$0xf]
  %v63 = vld [vmem:[%s0 + $0xc4] sm:$0xf]
  %v64 = vld [vmem:[%s0 + $0xc8] sm:$0xf]
  %v65 = vld [vmem:[%s0 + $0xcc] sm:$0xf]
  %v66 = vld [vmem:[%s0 + $0xd0] sm:$0xf]
  %v67 = vld [vmem:[%s0 + $0xd4] sm:$0xf]
  %v68 = vld [vmem:[%s0 + $0xd8] sm:$0xf]
  %v69 = vld [vmem:[%s0 + $0xdc] sm:$0xf]
  %v70 = vld [vmem:[%s0 + $0xe0] sm:$0xf]
  %v71 = vld [vmem:[%s0 + $0xe4] sm:$0xf]
  %v72 = vld [vmem:[%s0 + $0xe8] sm:$0xf]
  %v73 = vld [vmem:[%s0 + $0xec] sm:$0xf]
  %v74 = vld [vmem:[%s0 + $0xf0] sm:$0xf]
  %v75 = vld [vmem:[%s0 + $0xf4] sm:$0xf]
  %v76 = vld [vmem:[%s0 + $0xf8] sm:$0xf]
  %v77 = vld [vmem:[%s0 + $0xfc] sm:$0xf]
  %v78 = vunpack.c.l.bf16 %v14
  %v79 = vunpack.c.l.bf16 %v15
  %v80 = vunpack.c.l.bf16 %v16
  %v81 = vunpack.c.l.bf16 %v17
  %v82 = vunpack.c.l.bf16 %v18
  %v83 = vunpack.c.l.bf16 %v19
  %v84 = vunpack.c.l.bf16 %v20
  %v85 = vunpack.c.l.bf16 %v21
  %v86 = vunpack.c.l.bf16 %v22
  %v87 = vunpack.c.l.bf16 %v23
  %v88 = vunpack.c.l.bf16 %v24
  %v89 = vunpack.c.l.bf16 %v25
  %v90 = vunpack.c.l.bf16 %v26
  %v91 = vunpack.c.l.bf16 %v27
  %v92 = vunpack.c.l.bf16 %v28
  %v93 = vunpack.c.l.bf16 %v29
  %v94 = vunpack.c.l.bf16 %v30
  %v95 = vunpack.c.l.bf16 %v31
  %v96 = vunpack.c.l.bf16 %v32
  %v97 = vunpack.c.l.bf16 %v33
  %v98 = vunpack.c.l.bf16 %v34
  %v99 = vunpack.c.l.bf16 %v35
  %v100 = vunpack.c.l.bf16 %v36
  %v101 = vunpack.c.l.bf16 %v37
  %v102 = vunpack.c.l.bf16 %v38
  %v103 = vunpack.c.l.bf16 %v39
  %v104 = vunpack.c.l.bf16 %v40
  %v105 = vunpack.c.l.bf16 %v41
  %v106 = vunpack.c.l.bf16 %v42
  %v107 = vunpack.c.l.bf16 %v43
  %v108 = vunpack.c.l.bf16 %v44
  %v109 = vunpack.c.l.bf16 %v45
  %v110 = vunpack.c.l.bf16 %v46
  %v111 = vunpack.c.l.bf16 %v47
  %v112 = vunpack.c.l.bf16 %v48
  %v113 = vunpack.c.l.bf16 %v49
  %v114 = vunpack.c.l.bf16 %v50
  %v115 = vunpack.c.l.bf16 %v51
  %v116 = vunpack.c.l.bf16 %v52
  %v117 = vunpack.c.l.bf16 %v53
  %v118 = vunpack.c.l.bf16 %v54
  %v119 = vunpack.c.l.bf16 %v55
  %v120 = vunpack.c.l.bf16 %v56
  %v121 = vunpack.c.l.bf16 %v57
  %v122 = vunpack.c.l.bf16 %v58
  %v123 = vunpack.c.l.bf16 %v59
  %v124 = vunpack.c.l.bf16 %v60
  %v125 = vunpack.c.l.bf16 %v61
  %v126 = vunpack.c.l.bf16 %v62
  %v127 = vunpack.c.l.bf16 %v63
  %v128 = vunpack.c.l.bf16 %v64
  %v129 = vunpack.c.l.bf16 %v65
  %v130 = vunpack.c.l.bf16 %v66
  %v131 = vunpack.c.l.bf16 %v67
  %v132 = vunpack.c.l.bf16 %v68
  %v133 = vunpack.c.l.bf16 %v69
  %v134 = vunpack.c.l.bf16 %v70
  %v135 = vunpack.c.l.bf16 %v71
  %v136 = vunpack.c.l.bf16 %v72
  %v137 = vunpack.c.l.bf16 %v73
  %v138 = vunpack.c.l.bf16 %v74
  %v139 = vunpack.c.l.bf16 %v75
  %v140 = vunpack.c.l.bf16 %v76
  %v141 = vunpack.c.l.bf16 %v77
  %v142 = vld [vmem:[%s1] sm:$0x1]
  %v144 = vlaneseq
  %v145 = vshrl.u32 %v144, 7
  %v146 = vsub.s32 0, %v145
  %v147 = vrot.slane %v142, %v146
  %v149 = vmul.f32 %v78, %v147
  %v150 = vmul.f32 %v79, %v147
  %v151 = vmul.f32 %v80, %v147
  %v152 = vmul.f32 %v81, %v147
  %v153 = vmul.f32 %v82, %v147
  %v154 = vmul.f32 %v83, %v147
  %v155 = vmul.f32 %v84, %v147
  %v156 = vmul.f32 %v85, %v147
  %v157 = vmul.f32 %v86, %v147
  %v158 = vmul.f32 %v87, %v147
  %v159 = vmul.f32 %v88, %v147
  %v160 = vmul.f32 %v89, %v147
  %v161 = vmul.f32 %v90, %v147
  %v162 = vmul.f32 %v91, %v147
  %v163 = vmul.f32 %v92, %v147
  %v164 = vmul.f32 %v93, %v147
  %v165 = vmul.f32 %v94, %v147
  %v166 = vmul.f32 %v95, %v147
  %v167 = vmul.f32 %v96, %v147
  %v168 = vmul.f32 %v97, %v147
  %v169 = vmul.f32 %v98, %v147
  %v170 = vmul.f32 %v99, %v147
  %v171 = vmul.f32 %v100, %v147
  %v172 = vmul.f32 %v101, %v147
  %v173 = vmul.f32 %v102, %v147
  %v174 = vmul.f32 %v103, %v147
  %v175 = vmul.f32 %v104, %v147
  %v176 = vmul.f32 %v105, %v147
  %v177 = vmul.f32 %v106, %v147
  %v178 = vmul.f32 %v107, %v147
  %v179 = vmul.f32 %v108, %v147
  %v180 = vmul.f32 %v109, %v147
  %v181 = vmul.f32 %v110, %v147
  %v182 = vmul.f32 %v111, %v147
  %v183 = vmul.f32 %v112, %v147
  %v184 = vmul.f32 %v113, %v147
  %v185 = vmul.f32 %v114, %v147
  %v186 = vmul.f32 %v115, %v147
  %v187 = vmul.f32 %v116, %v147
  %v188 = vmul.f32 %v117, %v147
  %v189 = vmul.f32 %v118, %v147
  %v190 = vmul.f32 %v119, %v147
  %v191 = vmul.f32 %v120, %v147
  %v192 = vmul.f32 %v121, %v147
  %v193 = vmul.f32 %v122, %v147
  %v194 = vmul.f32 %v123, %v147
  %v195 = vmul.f32 %v124, %v147
  %v196 = vmul.f32 %v125, %v147
  %v197 = vmul.f32 %v126, %v147
  %v198 = vmul.f32 %v127, %v147
  %v199 = vmul.f32 %v128, %v147
  %v200 = vmul.f32 %v129, %v147
  %v201 = vmul.f32 %v130, %v147
  %v202 = vmul.f32 %v131, %v147
  %v203 = vmul.f32 %v132, %v147
  %v204 = vmul.f32 %v133, %v147
  %v205 = vmul.f32 %v134, %v147
  %v206 = vmul.f32 %v135, %v147
  %v207 = vmul.f32 %v136, %v147
  %v208 = vmul.f32 %v137, %v147
  %v209 = vmul.f32 %v138, %v147
  %v210 = vmul.f32 %v139, %v147
  %v211 = vmul.f32 %v140, %v147
  %v212 = vmul.f32 %v141, %v147
  %v213 = vld [vmem:[%s2] sm:$0x1]
  %v215 = vlaneseq
  %v216 = vshrl.u32 %v215, 7
  %v217 = vsub.s32 0, %v216
  %v218 = vrot.slane %v213, %v217
  %v220 = vadd.f32 %v149, %v218
  %v221 = vadd.f32 %v150, %v218
  %v222 = vadd.f32 %v151, %v218
  %v223 = vadd.f32 %v152, %v218
  %v224 = vadd.f32 %v153, %v218
  %v225 = vadd.f32 %v154, %v218
  %v226 = vadd.f32 %v155, %v218
  %v227 = vadd.f32 %v156, %v218
  %v228 = vadd.f32 %v157, %v218
  %v229 = vadd.f32 %v158, %v218
  %v230 = vadd.f32 %v159, %v218
  %v231 = vadd.f32 %v160, %v218
  %v232 = vadd.f32 %v161, %v218
  %v233 = vadd.f32 %v162, %v218
  %v234 = vadd.f32 %v163, %v218
  %v235 = vadd.f32 %v164, %v218
  %v236 = vadd.f32 %v165, %v218
  %v237 = vadd.f32 %v166, %v218
  %v238 = vadd.f32 %v167, %v218
  %v239 = vadd.f32 %v168, %v218
  %v240 = vadd.f32 %v169, %v218
  %v241 = vadd.f32 %v170, %v218
  %v242 = vadd.f32 %v171, %v218
  %v243 = vadd.f32 %v172, %v218
  %v244 = vadd.f32 %v173, %v218
  %v245 = vadd.f32 %v174, %v218
  %v246 = vadd.f32 %v175, %v218
  %v247 = vadd.f32 %v176, %v218
  %v248 = vadd.f32 %v177, %v218
  %v249 = vadd.f32 %v178, %v218
  %v250 = vadd.f32 %v179, %v218
  %v251 = vadd.f32 %v180, %v218
  %v252 = vadd.f32 %v181, %v218
  %v253 = vadd.f32 %v182, %v218
  %v254 = vadd.f32 %v183, %v218
  %v255 = vadd.f32 %v184, %v218
  %v256 = vadd.f32 %v185, %v218
  %v257 = vadd.f32 %v186, %v218
  %v258 = vadd.f32 %v187, %v218
  %v259 = vadd.f32 %v188, %v218
  %v260 = vadd.f32 %v189, %v218
  %v261 = vadd.f32 %v190, %v218
  %v262 = vadd.f32 %v191, %v218
  %v263 = vadd.f32 %v192, %v218
  %v264 = vadd.f32 %v193, %v218
  %v265 = vadd.f32 %v194, %v218
  %v266 = vadd.f32 %v195, %v218
  %v267 = vadd.f32 %v196, %v218
  %v268 = vadd.f32 %v197, %v218
  %v269 = vadd.f32 %v198, %v218
  %v270 = vadd.f32 %v199, %v218
  %v271 = vadd.f32 %v200, %v218
  %v272 = vadd.f32 %v201, %v218
  %v273 = vadd.f32 %v202, %v218
  %v274 = vadd.f32 %v203, %v218
  %v275 = vadd.f32 %v204, %v218
  %v276 = vadd.f32 %v205, %v218
  %v277 = vadd.f32 %v206, %v218
  %v278 = vadd.f32 %v207, %v218
  %v279 = vadd.f32 %v208, %v218
  %v280 = vadd.f32 %v209, %v218
  %v281 = vadd.f32 %v210, %v218
  %v282 = vadd.f32 %v211, %v218
  %v283 = vadd.f32 %v212, %v218
  %v284 = vsub.f32 0.0, %v220
  %v285 = vsub.f32 0.0, %v221
  %v286 = vsub.f32 0.0, %v222
  %v287 = vsub.f32 0.0, %v223
  %v288 = vsub.f32 0.0, %v224
  %v289 = vsub.f32 0.0, %v225
  %v290 = vsub.f32 0.0, %v226
  %v291 = vsub.f32 0.0, %v227
  %v292 = vsub.f32 0.0, %v228
  %v293 = vsub.f32 0.0, %v229
  %v294 = vsub.f32 0.0, %v230
  %v295 = vsub.f32 0.0, %v231
  %v296 = vsub.f32 0.0, %v232
  %v297 = vsub.f32 0.0, %v233
  %v298 = vsub.f32 0.0, %v234
  %v299 = vsub.f32 0.0, %v235
  %v300 = vsub.f32 0.0, %v236
  %v301 = vsub.f32 0.0, %v237
  %v302 = vsub.f32 0.0, %v238
  %v303 = vsub.f32 0.0, %v239
  %v304 = vsub.f32 0.0, %v240
  %v305 = vsub.f32 0.0, %v241
  %v306 = vsub.f32 0.0, %v242
  %v307 = vsub.f32 0.0, %v243
  %v308 = vsub.f32 0.0, %v244
  %v309 = vsub.f32 0.0, %v245
  %v310 = vsub.f32 0.0, %v246
  %v311 = vsub.f32 0.0, %v247
  %v312 = vsub.f32 0.0, %v248
  %v313 = vsub.f32 0.0, %v249
  %v314 = vsub.f32 0.0, %v250
  %v315 = vsub.f32 0.0, %v251
  %v316 = vsub.f32 0.0, %v252
  %v317 = vsub.f32 0.0, %v253
  %v318 = vsub.f32 0.0, %v254
  %v319 = vsub.f32 0.0, %v255
  %v320 = vsub.f32 0.0, %v256
  %v321 = vsub.f32 0.0, %v257
  %v322 = vsub.f32 0.0, %v258
  %v323 = vsub.f32 0.0, %v259
  %v324 = vsub.f32 0.0, %v260
  %v325 = vsub.f32 0.0, %v261
  %v326 = vsub.f32 0.0, %v262
  %v327 = vsub.f32 0.0, %v263
  %v328 = vsub.f32 0.0, %v264
  %v329 = vsub.f32 0.0, %v265
  %v330 = vsub.f32 0.0, %v266
  %v331 = vsub.f32 0.0, %v267
  %v332 = vsub.f32 0.0, %v268
  %v333 = vsub.f32 0.0, %v269
  %v334 = vsub.f32 0.0, %v270
  %v335 = vsub.f32 0.0, %v271
  %v336 = vsub.f32 0.0, %v272
  %v337 = vsub.f32 0.0, %v273
  %v338 = vsub.f32 0.0, %v274
  %v339 = vsub.f32 0.0, %v275
  %v340 = vsub.f32 0.0, %v276
  %v341 = vsub.f32 0.0, %v277
  %v342 = vsub.f32 0.0, %v278
  %v343 = vsub.f32 0.0, %v279
  %v344 = vsub.f32 0.0, %v280
  %v345 = vsub.f32 0.0, %v281
  %v346 = vsub.f32 0.0, %v282
  %v347 = vsub.f32 0.0, %v283
  %v348 = vmul.f32 %v284, 1.442695
  %v349 = vpow.pop %v348
  %v350 = vmul.f32 %v285, 1.442695
  %v351 = vpow.pop %v350
  %v352 = vmul.f32 %v286, 1.442695
  %v353 = vpow.pop %v352
  %v354 = vmul.f32 %v287, 1.442695
  %v355 = vpow.pop %v354
  %v356 = vmul.f32 %v288, 1.442695
  %v357 = vpow.pop %v356
  %v358 = vmul.f32 %v289, 1.442695
  %v359 = vpow.pop %v358
  %v360 = vmul.f32 %v290, 1.442695
  %v361 = vpow.pop %v360
  %v362 = vmul.f32 %v291, 1.442695
  %v363 = vpow.pop %v362
  %v364 = vmul.f32 %v292, 1.442695
  %v365 = vpow.pop %v364
  %v366 = vmul.f32 %v293, 1.442695
  %v367 = vpow.pop %v366
  %v368 = vmul.f32 %v294, 1.442695
  %v369 = vpow.pop %v368
  %v370 = vmul.f32 %v295, 1.442695
  %v371 = vpow.pop %v370
  %v372 = vmul.f32 %v296, 1.442695
  %v373 = vpow.pop %v372
  %v374 = vmul.f32 %v297, 1.442695
  %v375 = vpow.pop %v374
  %v376 = vmul.f32 %v298, 1.442695
  %v377 = vpow.pop %v376
  %v378 = vmul.f32 %v299, 1.442695
  %v379 = vpow.pop %v378
  %v380 = vmul.f32 %v300, 1.442695
  %v381 = vpow.pop %v380
  %v382 = vmul.f32 %v301, 1.442695
  %v383 = vpow.pop %v382
  %v384 = vmul.f32 %v302, 1.442695
  %v385 = vpow.pop %v384
  %v386 = vmul.f32 %v303, 1.442695
  %v387 = vpow.pop %v386
  %v388 = vmul.f32 %v304, 1.442695
  %v389 = vpow.pop %v388
  %v390 = vmul.f32 %v305, 1.442695
  %v391 = vpow.pop %v390
  %v392 = vmul.f32 %v306, 1.442695
  %v393 = vpow.pop %v392
  %v394 = vmul.f32 %v307, 1.442695
  %v395 = vpow.pop %v394
  %v396 = vmul.f32 %v308, 1.442695
  %v397 = vpow.pop %v396
  %v398 = vmul.f32 %v309, 1.442695
  %v399 = vpow.pop %v398
  %v400 = vmul.f32 %v310, 1.442695
  %v401 = vpow.pop %v400
  %v402 = vmul.f32 %v311, 1.442695
  %v403 = vpow.pop %v402
  %v404 = vmul.f32 %v312, 1.442695
  %v405 = vpow.pop %v404
  %v406 = vmul.f32 %v313, 1.442695
  %v407 = vpow.pop %v406
  %v408 = vmul.f32 %v314, 1.442695
  %v409 = vpow.pop %v408
  %v410 = vmul.f32 %v315, 1.442695
  %v411 = vpow.pop %v410
  %v412 = vmul.f32 %v316, 1.442695
  %v413 = vpow.pop %v412
  %v414 = vmul.f32 %v317, 1.442695
  %v415 = vpow.pop %v414
  %v416 = vmul.f32 %v318, 1.442695
  %v417 = vpow.pop %v416
  %v418 = vmul.f32 %v319, 1.442695
  %v419 = vpow.pop %v418
  %v420 = vmul.f32 %v320, 1.442695
  %v421 = vpow.pop %v420
  %v422 = vmul.f32 %v321, 1.442695
  %v423 = vpow.pop %v422
  %v424 = vmul.f32 %v322, 1.442695
  %v425 = vpow.pop %v424
  %v426 = vmul.f32 %v323, 1.442695
  %v427 = vpow.pop %v426
  %v428 = vmul.f32 %v324, 1.442695
  %v429 = vpow.pop %v428
  %v430 = vmul.f32 %v325, 1.442695
  %v431 = vpow.pop %v430
  %v432 = vmul.f32 %v326, 1.442695
  %v433 = vpow.pop %v432
  %v434 = vmul.f32 %v327, 1.442695
  %v435 = vpow.pop %v434
  %v436 = vmul.f32 %v328, 1.442695
  %v437 = vpow.pop %v436
  %v438 = vmul.f32 %v329, 1.442695
  %v439 = vpow.pop %v438
  %v440 = vmul.f32 %v330, 1.442695
  %v441 = vpow.pop %v440
  %v442 = vmul.f32 %v331, 1.442695
  %v443 = vpow.pop %v442
  %v444 = vmul.f32 %v332, 1.442695
  %v445 = vpow.pop %v444
  %v446 = vmul.f32 %v333, 1.442695
  %v447 = vpow.pop %v446
  %v448 = vmul.f32 %v334, 1.442695
  %v449 = vpow.pop %v448
  %v450 = vmul.f32 %v335, 1.442695
  %v451 = vpow.pop %v450
  %v452 = vmul.f32 %v336, 1.442695
  %v453 = vpow.pop %v452
  %v454 = vmul.f32 %v337, 1.442695
  %v455 = vpow.pop %v454
  %v456 = vmul.f32 %v338, 1.442695
  %v457 = vpow.pop %v456
  %v458 = vmul.f32 %v339, 1.442695
  %v459 = vpow.pop %v458
  %v460 = vmul.f32 %v340, 1.442695
  %v461 = vpow.pop %v460
  %v462 = vmul.f32 %v341, 1.442695
  %v463 = vpow.pop %v462
  %v464 = vmul.f32 %v342, 1.442695
  %v465 = vpow.pop %v464
  %v466 = vmul.f32 %v343, 1.442695
  %v467 = vpow.pop %v466
  %v468 = vmul.f32 %v344, 1.442695
  %v469 = vpow.pop %v468
  %v470 = vmul.f32 %v345, 1.442695
  %v471 = vpow.pop %v470
  %v472 = vmul.f32 %v346, 1.442695
  %v473 = vpow.pop %v472
  %v474 = vmul.f32 %v347, 1.442695
  %v475 = vpow.pop %v474
  %v476 = vadd.f32 %v349, 1.0
  %v477 = vadd.f32 %v351, 1.0
  %v478 = vadd.f32 %v353, 1.0
  %v479 = vadd.f32 %v355, 1.0
  %v480 = vadd.f32 %v357, 1.0
  %v481 = vadd.f32 %v359, 1.0
  %v482 = vadd.f32 %v361, 1.0
  %v483 = vadd.f32 %v363, 1.0
  %v484 = vadd.f32 %v365, 1.0
  %v485 = vadd.f32 %v367, 1.0
  %v486 = vadd.f32 %v369, 1.0
  %v487 = vadd.f32 %v371, 1.0
  %v488 = vadd.f32 %v373, 1.0
  %v489 = vadd.f32 %v375, 1.0
  %v490 = vadd.f32 %v377, 1.0
  %v491 = vadd.f32 %v379, 1.0
  %v492 = vadd.f32 %v381, 1.0
  %v493 = vadd.f32 %v383, 1.0
  %v494 = vadd.f32 %v385, 1.0
  %v495 = vadd.f32 %v387, 1.0
  %v496 = vadd.f32 %v389, 1.0
  %v497 = vadd.f32 %v391, 1.0
  %v498 = vadd.f32 %v393, 1.0
  %v499 = vadd.f32 %v395, 1.0
  %v500 = vadd.f32 %v397, 1.0
  %v501 = vadd.f32 %v399, 1.0
  %v502 = vadd.f32 %v401, 1.0
  %v503 = vadd.f32 %v403, 1.0
  %v504 = vadd.f32 %v405, 1.0
  %v505 = vadd.f32 %v407, 1.0
  %v506 = vadd.f32 %v409, 1.0
  %v507 = vadd.f32 %v411, 1.0
  %v508 = vadd.f32 %v413, 1.0
  %v509 = vadd.f32 %v415, 1.0
  %v510 = vadd.f32 %v417, 1.0
  %v511 = vadd.f32 %v419, 1.0
  %v512 = vadd.f32 %v421, 1.0
  %v513 = vadd.f32 %v423, 1.0
  %v514 = vadd.f32 %v425, 1.0
  %v515 = vadd.f32 %v427, 1.0
  %v516 = vadd.f32 %v429, 1.0
  %v517 = vadd.f32 %v431, 1.0
  %v518 = vadd.f32 %v433, 1.0
  %v519 = vadd.f32 %v435, 1.0
  %v520 = vadd.f32 %v437, 1.0
  %v521 = vadd.f32 %v439, 1.0
  %v522 = vadd.f32 %v441, 1.0
  %v523 = vadd.f32 %v443, 1.0
  %v524 = vadd.f32 %v445, 1.0
  %v525 = vadd.f32 %v447, 1.0
  %v526 = vadd.f32 %v449, 1.0
  %v527 = vadd.f32 %v451, 1.0
  %v528 = vadd.f32 %v453, 1.0
  %v529 = vadd.f32 %v455, 1.0
  %v530 = vadd.f32 %v457, 1.0
  %v531 = vadd.f32 %v459, 1.0
  %v532 = vadd.f32 %v461, 1.0
  %v533 = vadd.f32 %v463, 1.0
  %v534 = vadd.f32 %v465, 1.0
  %v535 = vadd.f32 %v467, 1.0
  %v536 = vadd.f32 %v469, 1.0
  %v537 = vadd.f32 %v471, 1.0
  %v538 = vadd.f32 %v473, 1.0
  %v539 = vadd.f32 %v475, 1.0
  %v540 = vrcp.pop %v476
  %v541 = vrcp.pop %v477
  %v542 = vrcp.pop %v478
  %v543 = vrcp.pop %v479
  %v544 = vrcp.pop %v480
  %v545 = vrcp.pop %v481
  %v546 = vrcp.pop %v482
  %v547 = vrcp.pop %v483
  %v548 = vrcp.pop %v484
  %v549 = vrcp.pop %v485
  %v550 = vrcp.pop %v486
  %v551 = vrcp.pop %v487
  %v552 = vrcp.pop %v488
  %v553 = vrcp.pop %v489
  %v554 = vrcp.pop %v490
  %v555 = vrcp.pop %v491
  %v556 = vrcp.pop %v492
  %v557 = vrcp.pop %v493
  %v558 = vrcp.pop %v494
  %v559 = vrcp.pop %v495
  %v560 = vrcp.pop %v496
  %v561 = vrcp.pop %v497
  %v562 = vrcp.pop %v498
  %v563 = vrcp.pop %v499
  %v564 = vrcp.pop %v500
  %v565 = vrcp.pop %v501
  %v566 = vrcp.pop %v502
  %v567 = vrcp.pop %v503
  %v568 = vrcp.pop %v504
  %v569 = vrcp.pop %v505
  %v570 = vrcp.pop %v506
  %v571 = vrcp.pop %v507
  %v572 = vrcp.pop %v508
  %v573 = vrcp.pop %v509
  %v574 = vrcp.pop %v510
  %v575 = vrcp.pop %v511
  %v576 = vrcp.pop %v512
  %v577 = vrcp.pop %v513
  %v578 = vrcp.pop %v514
  %v579 = vrcp.pop %v515
  %v580 = vrcp.pop %v516
  %v581 = vrcp.pop %v517
  %v582 = vrcp.pop %v518
  %v583 = vrcp.pop %v519
  %v584 = vrcp.pop %v520
  %v585 = vrcp.pop %v521
  %v586 = vrcp.pop %v522
  %v587 = vrcp.pop %v523
  %v588 = vrcp.pop %v524
  %v589 = vrcp.pop %v525
  %v590 = vrcp.pop %v526
  %v591 = vrcp.pop %v527
  %v592 = vrcp.pop %v528
  %v593 = vrcp.pop %v529
  %v594 = vrcp.pop %v530
  %v595 = vrcp.pop %v531
  %v596 = vrcp.pop %v532
  %v597 = vrcp.pop %v533
  %v598 = vrcp.pop %v534
  %v599 = vrcp.pop %v535
  %v600 = vrcp.pop %v536
  %v601 = vrcp.pop %v537
  %v602 = vrcp.pop %v538
  %v603 = vrcp.pop %v539
  %v604 = vmul.f32 %v220, %v540
  %v605 = vmul.f32 %v221, %v541
  %v606 = vmul.f32 %v222, %v542
  %v607 = vmul.f32 %v223, %v543
  %v608 = vmul.f32 %v224, %v544
  %v609 = vmul.f32 %v225, %v545
  %v610 = vmul.f32 %v226, %v546
  %v611 = vmul.f32 %v227, %v547
  %v612 = vmul.f32 %v228, %v548
  %v613 = vmul.f32 %v229, %v549
  %v614 = vmul.f32 %v230, %v550
  %v615 = vmul.f32 %v231, %v551
  %v616 = vmul.f32 %v232, %v552
  %v617 = vmul.f32 %v233, %v553
  %v618 = vmul.f32 %v234, %v554
  %v619 = vmul.f32 %v235, %v555
  %v620 = vmul.f32 %v236, %v556
  %v621 = vmul.f32 %v237, %v557
  %v622 = vmul.f32 %v238, %v558
  %v623 = vmul.f32 %v239, %v559
  %v624 = vmul.f32 %v240, %v560
  %v625 = vmul.f32 %v241, %v561
  %v626 = vmul.f32 %v242, %v562
  %v627 = vmul.f32 %v243, %v563
  %v628 = vmul.f32 %v244, %v564
  %v629 = vmul.f32 %v245, %v565
  %v630 = vmul.f32 %v246, %v566
  %v631 = vmul.f32 %v247, %v567
  %v632 = vmul.f32 %v248, %v568
  %v633 = vmul.f32 %v249, %v569
  %v634 = vmul.f32 %v250, %v570
  %v635 = vmul.f32 %v251, %v571
  %v636 = vmul.f32 %v252, %v572
  %v637 = vmul.f32 %v253, %v573
  %v638 = vmul.f32 %v254, %v574
  %v639 = vmul.f32 %v255, %v575
  %v640 = vmul.f32 %v256, %v576
  %v641 = vmul.f32 %v257, %v577
  %v642 = vmul.f32 %v258, %v578
  %v643 = vmul.f32 %v259, %v579
  %v644 = vmul.f32 %v260, %v580
  %v645 = vmul.f32 %v261, %v581
  %v646 = vmul.f32 %v262, %v582
  %v647 = vmul.f32 %v263, %v583
  %v648 = vmul.f32 %v264, %v584
  %v649 = vmul.f32 %v265, %v585
  %v650 = vmul.f32 %v266, %v586
  %v651 = vmul.f32 %v267, %v587
  %v652 = vmul.f32 %v268, %v588
  %v653 = vmul.f32 %v269, %v589
  %v654 = vmul.f32 %v270, %v590
  %v655 = vmul.f32 %v271, %v591
  %v656 = vmul.f32 %v272, %v592
  %v657 = vmul.f32 %v273, %v593
  %v658 = vmul.f32 %v274, %v594
  %v659 = vmul.f32 %v275, %v595
  %v660 = vmul.f32 %v276, %v596
  %v661 = vmul.f32 %v277, %v597
  %v662 = vmul.f32 %v278, %v598
  %v663 = vmul.f32 %v279, %v599
  %v664 = vmul.f32 %v280, %v600
  %v665 = vmul.f32 %v281, %v601
  %v666 = vmul.f32 %v282, %v602
  %v667 = vmul.f32 %v283, %v603
  %v668 = vpack.c.bf16 %v605, %v604
  %v669 = vpack.c.bf16 %v607, %v606
  %v670 = vpack.c.bf16 %v609, %v608
  %v671 = vpack.c.bf16 %v611, %v610
  %v672 = vpack.c.bf16 %v613, %v612
  %v673 = vpack.c.bf16 %v615, %v614
  %v674 = vpack.c.bf16 %v617, %v616
  %v675 = vpack.c.bf16 %v619, %v618
  %v676 = vpack.c.bf16 %v621, %v620
  %v677 = vpack.c.bf16 %v623, %v622
  %v678 = vpack.c.bf16 %v625, %v624
  %v679 = vpack.c.bf16 %v627, %v626
  %v680 = vpack.c.bf16 %v629, %v628
  %v681 = vpack.c.bf16 %v631, %v630
  %v682 = vpack.c.bf16 %v633, %v632
  %v683 = vpack.c.bf16 %v635, %v634
  %v684 = vpack.c.bf16 %v637, %v636
  %v685 = vpack.c.bf16 %v639, %v638
  %v686 = vpack.c.bf16 %v641, %v640
  %v687 = vpack.c.bf16 %v643, %v642
  %v688 = vpack.c.bf16 %v645, %v644
  %v689 = vpack.c.bf16 %v647, %v646
  %v690 = vpack.c.bf16 %v649, %v648
  %v691 = vpack.c.bf16 %v651, %v650
  %v692 = vpack.c.bf16 %v653, %v652
  %v693 = vpack.c.bf16 %v655, %v654
  %v694 = vpack.c.bf16 %v657, %v656
  %v695 = vpack.c.bf16 %v659, %v658
  %v696 = vpack.c.bf16 %v661, %v660
  %v697 = vpack.c.bf16 %v663, %v662
  %v698 = vpack.c.bf16 %v665, %v664
  %v699 = vpack.c.bf16 %v667, %v666
  %v732 = vunpack.c.l.b16 %v668
  %v733 = vunpack.c.h.b16 %v668
  %v734 = vunpack.c.l.b16 %v669
  %v735 = vunpack.c.h.b16 %v669
  %v736 = vunpack.c.l.b16 %v670
  %v737 = vunpack.c.h.b16 %v670
  %v738 = vunpack.c.l.b16 %v671
  %v739 = vunpack.c.h.b16 %v671
  %v740 = vunpack.c.l.b16 %v672
  %v741 = vunpack.c.h.b16 %v672
  %v742 = vunpack.c.l.b16 %v673
  %v743 = vunpack.c.h.b16 %v673
  %v744 = vunpack.c.l.b16 %v674
  %v745 = vunpack.c.h.b16 %v674
  %v746 = vunpack.c.l.b16 %v675
  %v747 = vunpack.c.h.b16 %v675
  %v748 = vunpack.c.l.b16 %v676
  %v749 = vunpack.c.h.b16 %v676
  %v750 = vunpack.c.l.b16 %v677
  %v751 = vunpack.c.h.b16 %v677
  %v752 = vunpack.c.l.b16 %v678
  %v753 = vunpack.c.h.b16 %v678
  %v754 = vunpack.c.l.b16 %v679
  %v755 = vunpack.c.h.b16 %v679
  %v756 = vunpack.c.l.b16 %v680
  %v757 = vunpack.c.h.b16 %v680
  %v758 = vunpack.c.l.b16 %v681
  %v759 = vunpack.c.h.b16 %v681
  %v760 = vunpack.c.l.b16 %v682
  %v761 = vunpack.c.h.b16 %v682
  %v762 = vunpack.c.l.b16 %v683
  %v763 = vunpack.c.h.b16 %v683
  %v764 = vunpack.c.l.b16 %v684
  %v765 = vunpack.c.h.b16 %v684
  %v766 = vunpack.c.l.b16 %v685
  %v767 = vunpack.c.h.b16 %v685
  %v768 = vunpack.c.l.b16 %v686
  %v769 = vunpack.c.h.b16 %v686
  %v770 = vunpack.c.l.b16 %v687
  %v771 = vunpack.c.h.b16 %v687
  %v772 = vunpack.c.l.b16 %v688
  %v773 = vunpack.c.h.b16 %v688
  %v774 = vunpack.c.l.b16 %v689
  %v775 = vunpack.c.h.b16 %v689
  %v776 = vunpack.c.l.b16 %v690
  %v777 = vunpack.c.h.b16 %v690
  %v778 = vunpack.c.l.b16 %v691
  %v779 = vunpack.c.h.b16 %v691
  %v780 = vunpack.c.l.b16 %v692
  %v781 = vunpack.c.h.b16 %v692
  %v782 = vunpack.c.l.b16 %v693
  %v783 = vunpack.c.h.b16 %v693
  %v784 = vunpack.c.l.b16 %v694
  %v785 = vunpack.c.h.b16 %v694
  %v786 = vunpack.c.l.b16 %v695
  %v787 = vunpack.c.h.b16 %v695
  %v788 = vunpack.c.l.b16 %v696
  %v789 = vunpack.c.h.b16 %v696
  %v790 = vunpack.c.l.b16 %v697
  %v791 = vunpack.c.h.b16 %v697
  %v792 = vunpack.c.l.b16 %v698
  %v793 = vunpack.c.h.b16 %v698
  %v794 = vunpack.c.l.b16 %v699
  %v795 = vunpack.c.h.b16 %v699
  %v796 = vpack.c.b16 %v732, %v732
  %v797 = vpack.c.b16 %v733, %v733
  %v798 = vpack.c.b16 %v734, %v734
  %v799 = vpack.c.b16 %v735, %v735
  %v800 = vpack.c.b16 %v736, %v736
  %v801 = vpack.c.b16 %v737, %v737
  %v802 = vpack.c.b16 %v738, %v738
  %v803 = vpack.c.b16 %v739, %v739
  %v804 = vpack.c.b16 %v740, %v740
  %v805 = vpack.c.b16 %v741, %v741
  %v806 = vpack.c.b16 %v742, %v742
  %v807 = vpack.c.b16 %v743, %v743
  %v808 = vpack.c.b16 %v744, %v744
  %v809 = vpack.c.b16 %v745, %v745
  %v810 = vpack.c.b16 %v746, %v746
  %v811 = vpack.c.b16 %v747, %v747
  %v812 = vpack.c.b16 %v748, %v748
  %v813 = vpack.c.b16 %v749, %v749
  %v814 = vpack.c.b16 %v750, %v750
  %v815 = vpack.c.b16 %v751, %v751
  %v816 = vpack.c.b16 %v752, %v752
  %v817 = vpack.c.b16 %v753, %v753
  %v818 = vpack.c.b16 %v754, %v754
  %v819 = vpack.c.b16 %v755, %v755
  %v820 = vpack.c.b16 %v756, %v756
  %v821 = vpack.c.b16 %v757, %v757
  %v822 = vpack.c.b16 %v758, %v758
  %v823 = vpack.c.b16 %v759, %v759
  %v824 = vpack.c.b16 %v760, %v760
  %v825 = vpack.c.b16 %v761, %v761
  %v826 = vpack.c.b16 %v762, %v762
  %v827 = vpack.c.b16 %v763, %v763
  %v828 = vpack.c.b16 %v764, %v764
  %v829 = vpack.c.b16 %v765, %v765
  %v830 = vpack.c.b16 %v766, %v766
  %v831 = vpack.c.b16 %v767, %v767
  %v832 = vpack.c.b16 %v768, %v768
  %v833 = vpack.c.b16 %v769, %v769
  %v834 = vpack.c.b16 %v770, %v770
  %v835 = vpack.c.b16 %v771, %v771
  %v836 = vpack.c.b16 %v772, %v772
  %v837 = vpack.c.b16 %v773, %v773
  %v838 = vpack.c.b16 %v774, %v774
  %v839 = vpack.c.b16 %v775, %v775
  %v840 = vpack.c.b16 %v776, %v776
  %v841 = vpack.c.b16 %v777, %v777
  %v842 = vpack.c.b16 %v778, %v778
  %v843 = vpack.c.b16 %v779, %v779
  %v844 = vpack.c.b16 %v780, %v780
  %v845 = vpack.c.b16 %v781, %v781
  %v846 = vpack.c.b16 %v782, %v782
  %v847 = vpack.c.b16 %v783, %v783
  %v848 = vpack.c.b16 %v784, %v784
  %v849 = vpack.c.b16 %v785, %v785
  %v850 = vpack.c.b16 %v786, %v786
  %v851 = vpack.c.b16 %v787, %v787
  %v852 = vpack.c.b16 %v788, %v788
  %v853 = vpack.c.b16 %v789, %v789
  %v854 = vpack.c.b16 %v790, %v790
  %v855 = vpack.c.b16 %v791, %v791
  %v856 = vpack.c.b16 %v792, %v792
  %v857 = vpack.c.b16 %v793, %v793
  %v858 = vpack.c.b16 %v794, %v794
  %v859 = vpack.c.b16 %v795, %v795
  %924 = vst [vmem:[%s3] sm:$0xf] %v796
  %925 = vst [vmem:[%s3 + $0x4] sm:$0xf] %v797
  %926 = vst [vmem:[%s3 + $0x8] sm:$0xf] %v798
  %927 = vst [vmem:[%s3 + $0xc] sm:$0xf] %v799
  %928 = vst [vmem:[%s3 + $0x10] sm:$0xf] %v800
  %929 = vst [vmem:[%s3 + $0x14] sm:$0xf] %v801
  %930 = vst [vmem:[%s3 + $0x18] sm:$0xf] %v802
  %931 = vst [vmem:[%s3 + $0x1c] sm:$0xf] %v803
  %932 = vst [vmem:[%s3 + $0x20] sm:$0xf] %v804
  %933 = vst [vmem:[%s3 + $0x24] sm:$0xf] %v805
  %934 = vst [vmem:[%s3 + $0x28] sm:$0xf] %v806
  %935 = vst [vmem:[%s3 + $0x2c] sm:$0xf] %v807
  %936 = vst [vmem:[%s3 + $0x30] sm:$0xf] %v808
  %937 = vst [vmem:[%s3 + $0x34] sm:$0xf] %v809
  %938 = vst [vmem:[%s3 + $0x38] sm:$0xf] %v810
  %939 = vst [vmem:[%s3 + $0x3c] sm:$0xf] %v811
  %940 = vst [vmem:[%s3 + $0x40] sm:$0xf] %v812
  %941 = vst [vmem:[%s3 + $0x44] sm:$0xf] %v813
  %942 = vst [vmem:[%s3 + $0x48] sm:$0xf] %v814
  %943 = vst [vmem:[%s3 + $0x4c] sm:$0xf] %v815
  %944 = vst [vmem:[%s3 + $0x50] sm:$0xf] %v816
  %945 = vst [vmem:[%s3 + $0x54] sm:$0xf] %v817
  %946 = vst [vmem:[%s3 + $0x58] sm:$0xf] %v818
  %947 = vst [vmem:[%s3 + $0x5c] sm:$0xf] %v819
  %948 = vst [vmem:[%s3 + $0x60] sm:$0xf] %v820
  %949 = vst [vmem:[%s3 + $0x64] sm:$0xf] %v821
  %950 = vst [vmem:[%s3 + $0x68] sm:$0xf] %v822
  %951 = vst [vmem:[%s3 + $0x6c] sm:$0xf] %v823
  %952 = vst [vmem:[%s3 + $0x70] sm:$0xf] %v824
  %953 = vst [vmem:[%s3 + $0x74] sm:$0xf] %v825
  %954 = vst [vmem:[%s3 + $0x78] sm:$0xf] %v826
  %955 = vst [vmem:[%s3 + $0x7c] sm:$0xf] %v827
  %956 = vst [vmem:[%s3 + $0x80] sm:$0xf] %v828
  %957 = vst [vmem:[%s3 + $0x84] sm:$0xf] %v829
  %958 = vst [vmem:[%s3 + $0x88] sm:$0xf] %v830
  %959 = vst [vmem:[%s3 + $0x8c] sm:$0xf] %v831
  %960 = vst [vmem:[%s3 + $0x90] sm:$0xf] %v832
  %961 = vst [vmem:[%s3 + $0x94] sm:$0xf] %v833
  %962 = vst [vmem:[%s3 + $0x98] sm:$0xf] %v834
  %963 = vst [vmem:[%s3 + $0x9c] sm:$0xf] %v835
  %964 = vst [vmem:[%s3 + $0xa0] sm:$0xf] %v836
  %965 = vst [vmem:[%s3 + $0xa4] sm:$0xf] %v837
  %966 = vst [vmem:[%s3 + $0xa8] sm:$0xf] %v838
  %967 = vst [vmem:[%s3 + $0xac] sm:$0xf] %v839
  %968 = vst [vmem:[%s3 + $0xb0] sm:$0xf] %v840
  %969 = vst [vmem:[%s3 + $0xb4] sm:$0xf] %v841
  %970 = vst [vmem:[%s3 + $0xb8] sm:$0xf] %v842
  %971 = vst [vmem:[%s3 + $0xbc] sm:$0xf] %v843
  %972 = vst [vmem:[%s3 + $0xc0] sm:$0xf] %v844
  %973 = vst [vmem:[%s3 + $0xc4] sm:$0xf] %v845
  %974 = vst [vmem:[%s3 + $0xc8] sm:$0xf] %v846
  %975 = vst [vmem:[%s3 + $0xcc] sm:$0xf] %v847
  %976 = vst [vmem:[%s3 + $0xd0] sm:$0xf] %v848
  %977 = vst [vmem:[%s3 + $0xd4] sm:$0xf] %v849
  %978 = vst [vmem:[%s3 + $0xd8] sm:$0xf] %v850
  %979 = vst [vmem:[%s3 + $0xdc] sm:$0xf] %v851
  %980 = vst [vmem:[%s3 + $0xe0] sm:$0xf] %v852
  %981 = vst [vmem:[%s3 + $0xe4] sm:$0xf] %v853
  %982 = vst [vmem:[%s3 + $0xe8] sm:$0xf] %v854
  %983 = vst [vmem:[%s3 + $0xec] sm:$0xf] %v855
  %984 = vst [vmem:[%s3 + $0xf0] sm:$0xf] %v856
  %985 = vst [vmem:[%s3 + $0xf4] sm:$0xf] %v857
  %986 = vst [vmem:[%s3 + $0xf8] sm:$0xf] %v858
  %987 = vst [vmem:[%s3 + $0xfc] sm:$0xf] %v859
  // Predicated region
  $region14: #{_lambda_.3} parent=0 // pred_check
    _
  $region15: #{_lambda_.3} parent=0 // pred_check_branch
    %989 = sbr.rel (0) target = $region17
  $region16: #{_lambda_.3} parent=0 // pred_region
    _
  $region17: #{_lambda_.3} parent=0 // pred_fallthru
    _
  // Predicated region
  $region18: #{_lambda_.3} parent=0 // pred_check
    _
  $region19: #{_lambda_.3} parent=0 // pred_check_branch
    %991 = sbr.rel (0) target = $region21
  $region20: #{_lambda_.3} parent=0 // pred_region
    _
  $region21: #{_lambda_.3} parent=0 // pred_fallthru
    _

// kernel: _lambda_.2
$region0: #{_lambda_.2}
  #allocation0 [shape = 'u32[]', space=smem, size = 0x4, offset = 0x4, fixed_abs, tag = 'smem constant byte address 0x4 - core index']
  #allocation1 [shape = 'u32[144,128]{1,0:T(1,128)}', space=vmem, size = 0x12000, scoped, tag = 'internal scratch']
  #allocation2 [shape = 'f32[512,128]{1,0:T(8,128)}', space=vmem, size = 0x40000, scoped, tag = 'scratch operand']
  %s0 = inlined_call_operand.vmem [shape: bf16[512,128], index: 0, kind: input, shape index: {}]
  %s1 = inlined_call_operand.vmem [shape: bf16[128,128], index: 1, kind: input, shape index: {}]
  %s2 = inlined_call_operand.vmem [shape: bf16[512,128], index: 2, kind: output, shape index: {0}]
  %s3 = inlined_call_operand.vmem [shape: f32[1,1,128], index: 3, kind: output, shape index: {1}]
  %s4 = inlined_call_operand.vmem [shape: f32[1,1,128], index: 4, kind: output, shape index: {2}]
  %5 = xla_tuple %s2, %s3, %s4
  %s6 = sld [smem:[#allocation0]]
  $region42: #{_lambda_.2} parent=0
    _
  %s8 = ssub.s32 1, %s6
  %s9 = scalar_select 0, %s8, %s6
  // Predicated region
  $region2: #{_lambda_.2} parent=0 // pred_check
    _
  $region3: #{_lambda_.2} parent=0 // pred_check_branch
    %11 = sbr.rel (0) target = $region5
  $region4: #{_lambda_.2} parent=0 // pred_region
    _
  $region5: #{_lambda_.2} parent=0 // pred_fallthru
    _
  // Predicated region
  $region6: #{_lambda_.2} parent=0 // pred_check
    _
  $region7: #{_lambda_.2} parent=0 // pred_check_branch
    %13 = sbr.rel (0) target = $region9
  $region8: #{_lambda_.2} parent=0 // pred_region
    _
  $region9: #{_lambda_.2} parent=0 // pred_fallthru
    _
  %p15 = scmp.eq.s32.totalorder 0, 0
  // Predicated region
  $region10: #{_lambda_.2} parent=0 // pred_check
    %p16 = pneg %p15
  $region11: #{_lambda_.2} parent=0 // pred_check_branch
    %18 = sbr.rel (%p16) target = $region13
  $region12: #{_lambda_.2} parent=0 // pred_region
    %19 = vst [vmem:[#allocation2] sm:$0xff] 0.0
    %20 = vst [vmem:[#allocation2 + $0x8] sm:$0xff] 0.0
    %21 = vst [vmem:[#allocation2 + $0x10] sm:$0xff] 0.0
    %22 = vst [vmem:[#allocation2 + $0x18] sm:$0xff] 0.0
    %23 = vst [vmem:[#allocation2 + $0x20] sm:$0xff] 0.0
    %24 = vst [vmem:[#allocation2 + $0x28] sm:$0xff] 0.0
    %25 = vst [vmem:[#allocation2 + $0x30] sm:$0xff] 0.0
    %26 = vst [vmem:[#allocation2 + $0x38] sm:$0xff] 0.0
    %27 = vst [vmem:[#allocation2 + $0x40] sm:$0xff] 0.0
    %28 = vst [vmem:[#allocation2 + $0x48] sm:$0xff] 0.0
    %29 = vst [vmem:[#allocation2 + $0x50] sm:$0xff] 0.0
    %30 = vst [vmem:[#allocation2 + $0x58] sm:$0xff] 0.0
    %31 = vst [vmem:[#allocation2 + $0x60] sm:$0xff] 0.0
    %32 = vst [vmem:[#allocation2 + $0x68] sm:$0xff] 0.0
    %33 = vst [vmem:[#allocation2 + $0x70] sm:$0xff] 0.0
    %34 = vst [vmem:[#allocation2 + $0x78] sm:$0xff] 0.0
    %35 = vst [vmem:[#allocation2 + $0x80] sm:$0xff] 0.0
    %36 = vst [vmem:[#allocation2 + $0x88] sm:$0xff] 0.0
    %37 = vst [vmem:[#allocation2 + $0x90] sm:$0xff] 0.0
    %38 = vst [vmem:[#allocation2 + $0x98] sm:$0xff] 0.0
    %39 = vst [vmem:[#allocation2 + $0xa0] sm:$0xff] 0.0
    %40 = vst [vmem:[#allocation2 + $0xa8] sm:$0xff] 0.0
    %41 = vst [vmem:[#allocation2 + $0xb0] sm:$0xff] 0.0
    %42 = vst [vmem:[#allocation2 + $0xb8] sm:$0xff] 0.0
    %43 = vst [vmem:[#allocation2 + $0xc0] sm:$0xff] 0.0
    %44 = vst [vmem:[#allocation2 + $0xc8] sm:$0xff] 0.0
    %45 = vst [vmem:[#allocation2 + $0xd0] sm:$0xff] 0.0
    %46 = vst [vmem:[#allocation2 + $0xd8] sm:$0xff] 0.0
    %47 = vst [vmem:[#allocation2 + $0xe0] sm:$0xff] 0.0
    %48 = vst [vmem:[#allocation2 + $0xe8] sm:$0xff] 0.0
    %49 = vst [vmem:[#allocation2 + $0xf0] sm:$0xff] 0.0
    %50 = vst [vmem:[#allocation2 + $0xf8] sm:$0xff] 0.0
    %51 = vst [vmem:[#allocation2 + $0x100] sm:$0xff] 0.0
    %52 = vst [vmem:[#allocation2 + $0x108] sm:$0xff] 0.0
    %53 = vst [vmem:[#allocation2 + $0x110] sm:$0xff] 0.0
    %54 = vst [vmem:[#allocation2 + $0x118] sm:$0xff] 0.0
    %55 = vst [vmem:[#allocation2 + $0x120] sm:$0xff] 0.0
    %56 = vst [vmem:[#allocation2 + $0x128] sm:$0xff] 0.0
    %57 = vst [vmem:[#allocation2 + $0x130] sm:$0xff] 0.0
    %58 = vst [vmem:[#allocation2 + $0x138] sm:$0xff] 0.0
    %59 = vst [vmem:[#allocation2 + $0x140] sm:$0xff] 0.0
    %60 = vst [vmem:[#allocation2 + $0x148] sm:$0xff] 0.0
    %61 = vst [vmem:[#allocation2 + $0x150] sm:$0xff] 0.0
    %62 = vst [vmem:[#allocation2 + $0x158] sm:$0xff] 0.0
    %63 = vst [vmem:[#allocation2 + $0x160] sm:$0xff] 0.0
    %64 = vst [vmem:[#allocation2 + $0x168] sm:$0xff] 0.0
    %65 = vst [vmem:[#allocation2 + $0x170] sm:$0xff] 0.0
    %66 = vst [vmem:[#allocation2 + $0x178] sm:$0xff] 0.0
    %67 = vst [vmem:[#allocation2 + $0x180] sm:$0xff] 0.0
    %68 = vst [vmem:[#allocation2 + $0x188] sm:$0xff] 0.0
    %69 = vst [vmem:[#allocation2 + $0x190] sm:$0xff] 0.0
    %70 = vst [vmem:[#allocation2 + $0x198] sm:$0xff] 0.0
    %71 = vst [vmem:[#allocation2 + $0x1a0] sm:$0xff] 0.0
    %72 = vst [vmem:[#allocation2 + $0x1a8] sm:$0xff] 0.0
    %73 = vst [vmem:[#allocation2 + $0x1b0] sm:$0xff] 0.0
    %74 = vst [vmem:[#allocation2 + $0x1b8] sm:$0xff] 0.0
    %75 = vst [vmem:[#allocation2 + $0x1c0] sm:$0xff] 0.0
    %76 = vst [vmem:[#allocation2 + $0x1c8] sm:$0xff] 0.0
    %77 = vst [vmem:[#allocation2 + $0x1d0] sm:$0xff] 0.0
    %78 = vst [vmem:[#allocation2 + $0x1d8] sm:$0xff] 0.0
    %79 = vst [vmem:[#allocation2 + $0x1e0] sm:$0xff] 0.0
    %80 = vst [vmem:[#allocation2 + $0x1e8] sm:$0xff] 0.0
    %81 = vst [vmem:[#allocation2 + $0x1f0] sm:$0xff] 0.0
    %82 = vst [vmem:[#allocation2 + $0x1f8] sm:$0xff] 0.0
  $region13: #{_lambda_.2} parent=0 // pred_fallthru
    _
  %v83 = vld [vmem:[#allocation2] sm:$0xff]
  %v84 = vld [vmem:[#allocation2 + $0x8] sm:$0xff]
  %v85 = vld [vmem:[#allocation2 + $0x10] sm:$0xff]
  %v86 = vld [vmem:[#allocation2 + $0x18] sm:$0xff]
  %v87 = vld [vmem:[#allocation2 + $0x20] sm:$0xff]
  %v88 = vld [vmem:[#allocation2 + $0x28] sm:$0xff]
  %v89 = vld [vmem:[#allocation2 + $0x30] sm:$0xff]
  %v90 = vld [vmem:[#allocation2 + $0x38] sm:$0xff]
  %v91 = vld [vmem:[#allocation2 + $0x40] sm:$0xff]
  %v92 = vld [vmem:[#allocation2 + $0x48] sm:$0xff]
  %v93 = vld [vmem:[#allocation2 + $0x50] sm:$0xff]
  %v94 = vld [vmem:[#allocation2 + $0x58] sm:$0xff]
  %v95 = vld [vmem:[#allocation2 + $0x60] sm:$0xff]
  %v96 = vld [vmem:[#allocation2 + $0x68] sm:$0xff]
  %v97 = vld [vmem:[#allocation2 + $0x70] sm:$0xff]
  %v98 = vld [vmem:[#allocation2 + $0x78] sm:$0xff]
  %v99 = vld [vmem:[#allocation2 + $0x80] sm:$0xff]
  %v100 = vld [vmem:[#allocation2 + $0x88] sm:$0xff]
  %v101 = vld [vmem:[#allocation2 + $0x90] sm:$0xff]
  %v102 = vld [vmem:[#allocation2 + $0x98] sm:$0xff]
  %v103 = vld [vmem:[#allocation2 + $0xa0] sm:$0xff]
  %v104 = vld [vmem:[#allocation2 + $0xa8] sm:$0xff]
  %v105 = vld [vmem:[#allocation2 + $0xb0] sm:$0xff]
  %v106 = vld [vmem:[#allocation2 + $0xb8] sm:$0xff]
  %v107 = vld [vmem:[#allocation2 + $0xc0] sm:$0xff]
  %v108 = vld [vmem:[#allocation2 + $0xc8] sm:$0xff]
  %v109 = vld [vmem:[#allocation2 + $0xd0] sm:$0xff]
  %v110 = vld [vmem:[#allocation2 + $0xd8] sm:$0xff]
  %v111 = vld [vmem:[#allocation2 + $0xe0] sm:$0xff]
  %v112 = vld [vmem:[#allocation2 + $0xe8] sm:$0xff]
  %v113 = vld [vmem:[#allocation2 + $0xf0] sm:$0xff]
  %v114 = vld [vmem:[#allocation2 + $0xf8] sm:$0xff]
  %v115 = vld [vmem:[#allocation2 + $0x100] sm:$0xff]
  %v116 = vld [vmem:[#allocation2 + $0x108] sm:$0xff]
  %v117 = vld [vmem:[#allocation2 + $0x110] sm:$0xff]
  %v118 = vld [vmem:[#allocation2 + $0x118] sm:$0xff]
  %v119 = vld [vmem:[#allocation2 + $0x120] sm:$0xff]
  %v120 = vld [vmem:[#allocation2 + $0x128] sm:$0xff]
  %v121 = vld [vmem:[#allocation2 + $0x130] sm:$0xff]
  %v122 = vld [vmem:[#allocation2 + $0x138] sm:$0xff]
  %v123 = vld [vmem:[#allocation2 + $0x140] sm:$0xff]
  %v124 = vld [vmem:[#allocation2 + $0x148] sm:$0xff]
  %v125 = vld [vmem:[#allocation2 + $0x150] sm:$0xff]
  %v126 = vld [vmem:[#allocation2 + $0x158] sm:$0xff]
  %v127 = vld [vmem:[#allocation2 + $0x160] sm:$0xff]
  %v128 = vld [vmem:[#allocation2 + $0x168] sm:$0xff]
  %v129 = vld [vmem:[#allocation2 + $0x170] sm:$0xff]
  %v130 = vld [vmem:[#allocation2 + $0x178] sm:$0xff]
  %v131 = vld [vmem:[#allocation2 + $0x180] sm:$0xff]
  %v132 = vld [vmem:[#allocation2 + $0x188] sm:$0xff]
  %v133 = vld [vmem:[#allocation2 + $0x190] sm:$0xff]
  %v134 = vld [vmem:[#allocation2 + $0x198] sm:$0xff]
  %v135 = vld [vmem:[#allocation2 + $0x1a0] sm:$0xff]
  %v136 = vld [vmem:[#allocation2 + $0x1a8] sm:$0xff]
  %v137 = vld [vmem:[#allocation2 + $0x1b0] sm:$0xff]
  %v138 = vld [vmem:[#allocation2 + $0x1b8] sm:$0xff]
  %v139 = vld [vmem:[#allocation2 + $0x1c0] sm:$0xff]
  %v140 = vld [vmem:[#allocation2 + $0x1c8] sm:$0xff]
  %v141 = vld [vmem:[#allocation2 + $0x1d0] sm:$0xff]
  %v142 = vld [vmem:[#allocation2 + $0x1d8] sm:$0xff]
  %v143 = vld [vmem:[#allocation2 + $0x1e0] sm:$0xff]
  %v144 = vld [vmem:[#allocation2 + $0x1e8] sm:$0xff]
  %v145 = vld [vmem:[#allocation2 + $0x1f0] sm:$0xff]
  %v146 = vld [vmem:[#allocation2 + $0x1f8] sm:$0xff]
  %v147 = vld [vmem:[%s0] sm:$0xf]
  %v148 = vld [vmem:[%s0 + $0x4] sm:$0xf]
  %v149 = vld [vmem:[%s0 + $0x8] sm:$0xf]
  %v150 = vld [vmem:[%s0 + $0xc] sm:$0xf]
  %v151 = vld [vmem:[%s0 + $0x10] sm:$0xf]
  %v152 = vld [vmem:[%s0 + $0x14] sm:$0xf]
  %v153 = vld [vmem:[%s0 + $0x18] sm:$0xf]
  %v154 = vld [vmem:[%s0 + $0x1c] sm:$0xf]
  %v155 = vld [vmem:[%s0 + $0x20] sm:$0xf]
  %v156 = vld [vmem:[%s0 + $0x24] sm:$0xf]
  %v157 = vld [vmem:[%s0 + $0x28] sm:$0xf]
  %v158 = vld [vmem:[%s0 + $0x2c] sm:$0xf]
  %v159 = vld [vmem:[%s0 + $0x30] sm:$0xf]
  %v160 = vld [vmem:[%s0 + $0x34] sm:$0xf]
  %v161 = vld [vmem:[%s0 + $0x38] sm:$0xf]
  %v162 = vld [vmem:[%s0 + $0x3c] sm:$0xf]
  %v163 = vld [vmem:[%s0 + $0x40] sm:$0xf]
  %v164 = vld [vmem:[%s0 + $0x44] sm:$0xf]
  %v165 = vld [vmem:[%s0 + $0x48] sm:$0xf]
  %v166 = vld [vmem:[%s0 + $0x4c] sm:$0xf]
  %v167 = vld [vmem:[%s0 + $0x50] sm:$0xf]
  %v168 = vld [vmem:[%s0 + $0x54] sm:$0xf]
  %v169 = vld [vmem:[%s0 + $0x58] sm:$0xf]
  %v170 = vld [vmem:[%s0 + $0x5c] sm:$0xf]
  %v171 = vld [vmem:[%s0 + $0x60] sm:$0xf]
  %v172 = vld [vmem:[%s0 + $0x64] sm:$0xf]
  %v173 = vld [vmem:[%s0 + $0x68] sm:$0xf]
  %v174 = vld [vmem:[%s0 + $0x6c] sm:$0xf]
  %v175 = vld [vmem:[%s0 + $0x70] sm:$0xf]
  %v176 = vld [vmem:[%s0 + $0x74] sm:$0xf]
  %v177 = vld [vmem:[%s0 + $0x78] sm:$0xf]
  %v178 = vld [vmem:[%s0 + $0x7c] sm:$0xf]
  %v179 = vld [vmem:[%s0 + $0x80] sm:$0xf]
  %v180 = vld [vmem:[%s0 + $0x84] sm:$0xf]
  %v181 = vld [vmem:[%s0 + $0x88] sm:$0xf]
  %v182 = vld [vmem:[%s0 + $0x8c] sm:$0xf]
  %v183 = vld [vmem:[%s0 + $0x90] sm:$0xf]
  %v184 = vld [vmem:[%s0 + $0x94] sm:$0xf]
  %v185 = vld [vmem:[%s0 + $0x98] sm:$0xf]
  %v186 = vld [vmem:[%s0 + $0x9c] sm:$0xf]
  %v187 = vld [vmem:[%s0 + $0xa0] sm:$0xf]
  %v188 = vld [vmem:[%s0 + $0xa4] sm:$0xf]
  %v189 = vld [vmem:[%s0 + $0xa8] sm:$0xf]
  %v190 = vld [vmem:[%s0 + $0xac] sm:$0xf]
  %v191 = vld [vmem:[%s0 + $0xb0] sm:$0xf]
  %v192 = vld [vmem:[%s0 + $0xb4] sm:$0xf]
  %v193 = vld [vmem:[%s0 + $0xb8] sm:$0xf]
  %v194 = vld [vmem:[%s0 + $0xbc] sm:$0xf]
  %v195 = vld [vmem:[%s0 + $0xc0] sm:$0xf]
  %v196 = vld [vmem:[%s0 + $0xc4] sm:$0xf]
  %v197 = vld [vmem:[%s0 + $0xc8] sm:$0xf]
  %v198 = vld [vmem:[%s0 + $0xcc] sm:$0xf]
  %v199 = vld [vmem:[%s0 + $0xd0] sm:$0xf]
  %v200 = vld [vmem:[%s0 + $0xd4] sm:$0xf]
  %v201 = vld [vmem:[%s0 + $0xd8] sm:$0xf]
  %v202 = vld [vmem:[%s0 + $0xdc] sm:$0xf]
  %v203 = vld [vmem:[%s0 + $0xe0] sm:$0xf]
  %v204 = vld [vmem:[%s0 + $0xe4] sm:$0xf]
  %v205 = vld [vmem:[%s0 + $0xe8] sm:$0xf]
  %v206 = vld [vmem:[%s0 + $0xec] sm:$0xf]
  %v207 = vld [vmem:[%s0 + $0xf0] sm:$0xf]
  %v208 = vld [vmem:[%s0 + $0xf4] sm:$0xf]
  %v209 = vld [vmem:[%s0 + $0xf8] sm:$0xf]
  %v210 = vld [vmem:[%s0 + $0xfc] sm:$0xf]
  %v211 = vld [vmem:[%s1] sm:$0xf]
  %v212 = vld [vmem:[%s1 + $0x4] sm:$0xf]
  %v213 = vld [vmem:[%s1 + $0x8] sm:$0xf]
  %v214 = vld [vmem:[%s1 + $0xc] sm:$0xf]
  %v215 = vld [vmem:[%s1 + $0x10] sm:$0xf]
  %v216 = vld [vmem:[%s1 + $0x14] sm:$0xf]
  %v217 = vld [vmem:[%s1 + $0x18] sm:$0xf]
  %v218 = vld [vmem:[%s1 + $0x1c] sm:$0xf]
  %v219 = vld [vmem:[%s1 + $0x20] sm:$0xf]
  %v220 = vld [vmem:[%s1 + $0x24] sm:$0xf]
  %v221 = vld [vmem:[%s1 + $0x28] sm:$0xf]
  %v222 = vld [vmem:[%s1 + $0x2c] sm:$0xf]
  %v223 = vld [vmem:[%s1 + $0x30] sm:$0xf]
  %v224 = vld [vmem:[%s1 + $0x34] sm:$0xf]
  %v225 = vld [vmem:[%s1 + $0x38] sm:$0xf]
  %v226 = vld [vmem:[%s1 + $0x3c] sm:$0xf]
  %v291 = vunpack.c.l.b16 %v147
  %v292 = vunpack.c.l.b16 %v148
  %v293 = vunpack.c.l.b16 %v149
  %v294 = vunpack.c.l.b16 %v150
  %v295 = vunpack.c.l.b16 %v151
  %v296 = vunpack.c.l.b16 %v152
  %v297 = vunpack.c.l.b16 %v153
  %v298 = vunpack.c.l.b16 %v154
  %v299 = vunpack.c.l.b16 %v155
  %v300 = vunpack.c.l.b16 %v156
  %v301 = vunpack.c.l.b16 %v157
  %v302 = vunpack.c.l.b16 %v158
  %v303 = vunpack.c.l.b16 %v159
  %v304 = vunpack.c.l.b16 %v160
  %v305 = vunpack.c.l.b16 %v161
  %v306 = vunpack.c.l.b16 %v162
  %v307 = vunpack.c.l.b16 %v163
  %v308 = vunpack.c.l.b16 %v164
  %v309 = vunpack.c.l.b16 %v165
  %v310 = vunpack.c.l.b16 %v166
  %v311 = vunpack.c.l.b16 %v167
  %v312 = vunpack.c.l.b16 %v168
  %v313 = vunpack.c.l.b16 %v169
  %v314 = vunpack.c.l.b16 %v170
  %v315 = vunpack.c.l.b16 %v171
  %v316 = vunpack.c.l.b16 %v172
  %v317 = vunpack.c.l.b16 %v173
  %v318 = vunpack.c.l.b16 %v174
  %v319 = vunpack.c.l.b16 %v175
  %v320 = vunpack.c.l.b16 %v176
  %v321 = vunpack.c.l.b16 %v177
  %v322 = vunpack.c.l.b16 %v178
  %v323 = vunpack.c.l.b16 %v179
  %v324 = vunpack.c.l.b16 %v180
  %v325 = vunpack.c.l.b16 %v181
  %v326 = vunpack.c.l.b16 %v182
  %v327 = vunpack.c.l.b16 %v183
  %v328 = vunpack.c.l.b16 %v184
  %v329 = vunpack.c.l.b16 %v185
  %v330 = vunpack.c.l.b16 %v186
  %v331 = vunpack.c.l.b16 %v187
  %v332 = vunpack.c.l.b16 %v188
  %v333 = vunpack.c.l.b16 %v189
  %v334 = vunpack.c.l.b16 %v190
  %v335 = vunpack.c.l.b16 %v191
  %v336 = vunpack.c.l.b16 %v192
  %v337 = vunpack.c.l.b16 %v193
  %v338 = vunpack.c.l.b16 %v194
  %v339 = vunpack.c.l.b16 %v195
  %v340 = vunpack.c.l.b16 %v196
  %v341 = vunpack.c.l.b16 %v197
  %v342 = vunpack.c.l.b16 %v198
  %v343 = vunpack.c.l.b16 %v199
  %v344 = vunpack.c.l.b16 %v200
  %v345 = vunpack.c.l.b16 %v201
  %v346 = vunpack.c.l.b16 %v202
  %v347 = vunpack.c.l.b16 %v203
  %v348 = vunpack.c.l.b16 %v204
  %v349 = vunpack.c.l.b16 %v205
  %v350 = vunpack.c.l.b16 %v206
  %v351 = vunpack.c.l.b16 %v207
  %v352 = vunpack.c.l.b16 %v208
  %v353 = vunpack.c.l.b16 %v209
  %v354 = vunpack.c.l.b16 %v210
  %v355 = vpack.c.b16 %v292, %v291
  %v356 = vpack.c.b16 %v294, %v293
  %v357 = vpack.c.b16 %v296, %v295
  %v358 = vpack.c.b16 %v298, %v297
  %v359 = vpack.c.b16 %v300, %v299
  %v360 = vpack.c.b16 %v302, %v301
  %v361 = vpack.c.b16 %v304, %v303
  %v362 = vpack.c.b16 %v306, %v305
  %v363 = vpack.c.b16 %v308, %v307
  %v364 = vpack.c.b16 %v310, %v309
  %v365 = vpack.c.b16 %v312, %v311
  %v366 = vpack.c.b16 %v314, %v313
  %v367 = vpack.c.b16 %v316, %v315
  %v368 = vpack.c.b16 %v318, %v317
  %v369 = vpack.c.b16 %v320, %v319
  %v370 = vpack.c.b16 %v322, %v321
  %v371 = vpack.c.b16 %v324, %v323
  %v372 = vpack.c.b16 %v326, %v325
  %v373 = vpack.c.b16 %v328, %v327
  %v374 = vpack.c.b16 %v330, %v329
  %v375 = vpack.c.b16 %v332, %v331
  %v376 = vpack.c.b16 %v334, %v333
  %v377 = vpack.c.b16 %v336, %v335
  %v378 = vpack.c.b16 %v338, %v337
  %v379 = vpack.c.b16 %v340, %v339
  %v380 = vpack.c.b16 %v342, %v341
  %v381 = vpack.c.b16 %v344, %v343
  %v382 = vpack.c.b16 %v346, %v345
  %v383 = vpack.c.b16 %v348, %v347
  %v384 = vpack.c.b16 %v350, %v349
  %v385 = vpack.c.b16 %v352, %v351
  %v386 = vpack.c.b16 %v354, %v353
  %v435 = vunpack.c.l.b16 %v211
  %v436 = vunpack.c.l.b16 %v212
  %v437 = vunpack.c.l.b16 %v213
  %v438 = vunpack.c.l.b16 %v214
  %v439 = vunpack.c.l.b16 %v215
  %v440 = vunpack.c.l.b16 %v216
  %v441 = vunpack.c.l.b16 %v217
  %v442 = vunpack.c.l.b16 %v218
  %v443 = vunpack.c.l.b16 %v219
  %v444 = vunpack.c.l.b16 %v220
  %v445 = vunpack.c.l.b16 %v221
  %v446 = vunpack.c.l.b16 %v222
  %v447 = vunpack.c.l.b16 %v223
  %v448 = vunpack.c.l.b16 %v224
  %v449 = vunpack.c.l.b16 %v225
  %v450 = vunpack.c.l.b16 %v226
  %v451 = vpack.c.b16 %v436, %v435
  %v452 = vpack.c.b16 %v438, %v437
  %v453 = vpack.c.b16 %v440, %v439
  %v454 = vpack.c.b16 %v442, %v441
  %v455 = vpack.c.b16 %v444, %v443
  %v456 = vpack.c.b16 %v446, %v445
  %v457 = vpack.c.b16 %v448, %v447
  %v458 = vpack.c.b16 %v450, %v449
  %467 = vmatprep.subr.bf16.mxu0 0
  %468 = vmatpush1.bf16.msra.mxu0 %v451
  %469 = vmatprep.subr.bf16.mxu0 0
  %470 = vmatpush1.bf16.msra.mxu0 %v452
  %471 = vmatprep.subr.bf16.mxu0 0
  %472 = vmatpush1.bf16.msra.mxu0 %v453
  %473 = vmatprep.subr.bf16.mxu0 0
  %474 = vmatpush1.bf16.msra.mxu0 %v454
  %475 = vmatprep.subr.bf16.mxu0 0
  %476 = vmatpush1.bf16.msra.mxu0 %v455
  %477 = vmatprep.subr.bf16.mxu0 0
  %478 = vmatpush1.bf16.msra.mxu0 %v456
  %479 = vmatprep.subr.bf16.mxu0 0
  %480 = vmatpush1.bf16.msra.mxu0 %v457
  %481 = vmatprep.subr.bf16.mxu0 0
  %482 = vmatpush1.bf16.msra.mxu0 %v458
  %483 = vmatprep.subr.bf16.mxu0 0
  %484 = vmatpush1.bf16.msra.mxu0 0
  %485 = vmatprep.subr.bf16.mxu0 0
  %486 = vmatpush1.bf16.msra.mxu0 0
  %487 = vmatprep.subr.bf16.mxu0 0
  %488 = vmatpush1.bf16.msra.mxu0 0
  %489 = vmatprep.subr.bf16.mxu0 0
  %490 = vmatpush1.bf16.msra.mxu0 0
  %491 = vmatprep.subr.bf16.mxu0 0
  %492 = vmatpush1.bf16.msra.mxu0 0
  %493 = vmatprep.subr.bf16.mxu0 0
  %494 = vmatpush1.bf16.msra.mxu0 0
  %495 = vmatprep.subr.bf16.mxu0 0
  %496 = vmatpush1.bf16.msra.mxu0 0
  %497 = vmatprep.subr.bf16.mxu0 0
  %498 = vmatpush1.bf16.msra.mxu0 0
  %499 = vmatprep.mubr.bf16.mxu0 0
  %500 = vmatmul.mubr.bf16.gmra.mrb[0].mxu0 %v355
  %v501 = vpop.f32.mrb[0].mxu0
  %v502 = vadd.f32 0.0, %v501
  %v503 = vpop.f32.mrb[0].mxu0
  %v504 = vpop.f32.mrb[0].mxu0
  %v505 = vadd.f32 0.0, %v504
  %v506 = vpop.f32.mrb[0].mxu0
  %507 = vmatprep.mubr.bf16.mxu0 0
  %508 = vmatmul.mubr.bf16.gmra.mrb[0].mxu0 %v356
  %v509 = vpop.f32.mrb[0].mxu0
  %v510 = vadd.f32 0.0, %v509
  %v511 = vpop.f32.mrb[0].mxu0
  %v512 = vpop.f32.mrb[0].mxu0
  %v513 = vadd.f32 0.0, %v512
  %v514 = vpop.f32.mrb[0].mxu0
  %515 = vmatprep.mubr.bf16.mxu0 0
  %516 = vmatmul.mubr.bf16.gmra.mrb[0].mxu0 %v357
  %v517 = vpop.f32.mrb[0].mxu0
  %v518 = vadd.f32 0.0, %v517
  %v519 = vpop.f32.mrb[0].mxu0
  %v520 = vpop.f32.mrb[0].mxu0
  %v521 = vadd.f32 0.0, %v520
  %v522 = vpop.f32.mrb[0].mxu0
  %523 = vmatprep.mubr.bf16.mxu0 0
  %524 = vmatmul.mubr.bf16.gmra.mrb[0].mxu0 %v358
  %v525 = vpop.f32.mrb[0].mxu0
  %v526 = vadd.f32 0.0, %v525
  %v527 = vpop.f32.mrb[0].mxu0
  %v528 = vpop.f32.mrb[0].mxu0
  %v529 = vadd.f32 0.0, %v528
  %v530 = vpop.f32.mrb[0].mxu0
  %531 = vmatprep.mubr.bf16.mxu0 0
  %532 = vmatmul.mubr.bf16.gmra.mrb[0].mxu0 %v359
  %v533 = vpop.f32.mrb[0].mxu0
  %v534 = vadd.f32 0.0, %v533
  %v535 = vpop.f32.mrb[0].mxu0
  %v536 = vpop.f32.mrb[0].mxu0
  %v537 = vadd.f32 0.0, %v536
  %v538 = vpop.f32.mrb[0].mxu0
  %539 = vmatprep.mubr.bf16.mxu0 0
  %540 = vmatmul.mubr.bf16.gmra.mrb[0].mxu0 %v360
  %v541 = vpop.f32.mrb[0].mxu0
  %v542 = vadd.f32 0.0, %v541
  %v543 = vpop.f32.mrb[0].mxu0
  %v544 = vpop.f32.mrb[0].mxu0
  %v545 = vadd.f32 0.0, %v544
  %v546 = vpop.f32.mrb[0].mxu0
  %547 = vmatprep.mubr.bf16.mxu0 0
  %548 = vmatmul.mubr.bf16.gmra.mrb[0].mxu0 %v361
  %v549 = vpop.f32.mrb[0].mxu0
  %v550 = vadd.f32 0.0, %v549
  %v551 = vpop.f32.mrb[0].mxu0
  %v552 = vpop.f32.mrb[0].mxu0
  %v553 = vadd.f32 0.0, %v552
  %v554 = vpop.f32.mrb[0].mxu0
  %555 = vmatprep.mubr.bf16.mxu0 0
  %556 = vmatmul.mubr.bf16.gmra.mrb[0].mxu0 %v362
  %v557 = vpop.f32.mrb[0].mxu0
  %v558 = vadd.f32 0.0, %v557
  %v559 = vpop.f32.mrb[0].mxu0
  %v560 = vpop.f32.mrb[0].mxu0
  %v561 = vadd.f32 0.0, %v560
  %v562 = vpop.f32.mrb[0].mxu0
  %563 = vmatprep.mubr.bf16.mxu0 0
  %564 = vmatmul.mubr.bf16.gmra.mrb[0].mxu0 %v363
  %v565 = vpop.f32.mrb[0].mxu0
  %v566 = vadd.f32 0.0, %v565
  %v567 = vpop.f32.mrb[0].mxu0
  %v568 = vpop.f32.mrb[0].mxu0
  %v569 = vadd.f32 0.0, %v568
  %v570 = vpop.f32.mrb[0].mxu0
  %571 = vmatprep.mubr.bf16.mxu0 0
  %572 = vmatmul.mubr.bf16.gmra.mrb[0].mxu0 %v364
  %v573 = vpop.f32.mrb[0].mxu0
  %v574 = vadd.f32 0.0, %v573
  %v575 = vpop.f32.mrb[0].mxu0
  %v576 = vpop.f32.mrb[0].mxu0
  %v577 = vadd.f32 0.0, %v576
  %v578 = vpop.f32.mrb[0].mxu0
  %579 = vmatprep.mubr.bf16.mxu0 0
  %580 = vmatmul.mubr.bf16.gmra.mrb[0].mxu0 %v365
  %v581 = vpop.f32.mrb[0].mxu0
  %v582 = vadd.f32 0.0, %v581
  %v583 = vpop.f32.mrb[0].mxu0
  %v584 = vpop.f32.mrb[0].mxu0
  %v585 = vadd.f32 0.0, %v584
  %v586 = vpop.f32.mrb[0].mxu0
  %587 = vmatprep.mubr.bf16.mxu0 0
  %588 = vmatmul.mubr.bf16.gmra.mrb[0].mxu0 %v366
  %v589 = vpop.f32.mrb[0].mxu0
  %v590 = vadd.f32 0.0, %v589
  %v591 = vpop.f32.mrb[0].mxu0
  %v592 = vpop.f32.mrb[0].mxu0
  %v593 = vadd.f32 0.0, %v592
  %v594 = vpop.f32.mrb[0].mxu0
  %595 = vmatprep.mubr.bf16.mxu0 0
  %596 = vmatmul.mubr.bf16.gmra.mrb[0].mxu0 %v367
  %v597 = vpop.f32.mrb[0].mxu0
  %v598 = vadd.f32 0.0, %v597
  %v599 = vpop.f32.mrb[0].mxu0
  %v600 = vpop.f32.mrb[0].mxu0
  %v601 = vadd.f32 0.0, %v600
  %v602 = vpop.f32.mrb[0].mxu0
  %603 = vmatprep.mubr.bf16.mxu0 0
  %604 = vmatmul.mubr.bf16.gmra.mrb[0].mxu0 %v368
  %v605 = vpop.f32.mrb[0].mxu0
  %v606 = vadd.f32 0.0, %v605
  %v607 = vpop.f32.mrb[0].mxu0
  %v608 = vpop.f32.mrb[0].mxu0
  %v609 = vadd.f32 0.0, %v608
  %v610 = vpop.f32.mrb[0].mxu0
  %611 = vmatprep.mubr.bf16.mxu0 0
  %612 = vmatmul.mubr.bf16.gmra.mrb[0].mxu0 %v369
  %v613 = vpop.f32.mrb[0].mxu0
  %v614 = vadd.f32 0.0, %v613
  %v615 = vpop.f32.mrb[0].mxu0
  %v616 = vpop.f32.mrb[0].mxu0
  %v617 = vadd.f32 0.0, %v616
  %v618 = vpop.f32.mrb[0].mxu0
  %619 = vmatprep.mubr.bf16.mxu0 0
  %620 = vmatmul.mubr.bf16.gmra.mrb[0].mxu0 %v370
  %v621 = vpop.f32.mrb[0].mxu0
  %v622 = vadd.f32 0.0, %v621
  %v623 = vpop.f32.mrb[0].mxu0
  %v624 = vpop.f32.mrb[0].mxu0
  %v625 = vadd.f32 0.0, %v624
  %v626 = vpop.f32.mrb[0].mxu0
  %627 = vmatprep.mubr.bf16.mxu0 0
  %628 = vmatmul.mubr.bf16.gmra.mrb[0].mxu0 %v371
  %v629 = vpop.f32.mrb[0].mxu0
  %v630 = vadd.f32 0.0, %v629
  %v631 = vpop.f32.mrb[0].mxu0
  %v632 = vpop.f32.mrb[0].mxu0
  %v633 = vadd.f32 0.0, %v632
  %v634 = vpop.f32.mrb[0].mxu0
  %635 = vmatprep.mubr.bf16.mxu0 0
  %636 = vmatmul.mubr.bf16.gmra.mrb[0].mxu0 %v372
  %v637 = vpop.f32.mrb[0].mxu0
  %v638 = vadd.f32 0.0, %v637
  %v639 = vpop.f32.mrb[0].mxu0
  %v640 = vpop.f32.mrb[0].mxu0
  %v641 = vadd.f32 0.0, %v640
  %v642 = vpop.f32.mrb[0].mxu0
  %643 = vmatprep.mubr.bf16.mxu0 0
  %644 = vmatmul.mubr.bf16.gmra.mrb[0].mxu0 %v373
  %v645 = vpop.f32.mrb[0].mxu0
  %v646 = vadd.f32 0.0, %v645
  %v647 = vpop.f32.mrb[0].mxu0
  %v648 = vpop.f32.mrb[0].mxu0
  %v649 = vadd.f32 0.0, %v648
  %v650 = vpop.f32.mrb[0].mxu0
  %651 = vmatprep.mubr.bf16.mxu0 0
  %652 = vmatmul.mubr.bf16.gmra.mrb[0].mxu0 %v374
  %v653 = vpop.f32.mrb[0].mxu0
  %v654 = vadd.f32 0.0, %v653
  %v655 = vpop.f32.mrb[0].mxu0
  %v656 = vpop.f32.mrb[0].mxu0
  %v657 = vadd.f32 0.0, %v656
  %v658 = vpop.f32.mrb[0].mxu0
  %659 = vmatprep.mubr.bf16.mxu0 0
  %660 = vmatmul.mubr.bf16.gmra.mrb[0].mxu0 %v375
  %v661 = vpop.f32.mrb[0].mxu0
  %v662 = vadd.f32 0.0, %v661
  %v663 = vpop.f32.mrb[0].mxu0
  %v664 = vpop.f32.mrb[0].mxu0
  %v665 = vadd.f32 0.0, %v664
  %v666 = vpop.f32.mrb[0].mxu0
  %667 = vmatprep.mubr.bf16.mxu0 0
  %668 = vmatmul.mubr.bf16.gmra.mrb[0].mxu0 %v376
  %v669 = vpop.f32.mrb[0].mxu0
  %v670 = vadd.f32 0.0, %v669
  %v671 = vpop.f32.mrb[0].mxu0
  %v672 = vpop.f32.mrb[0].mxu0
  %v673 = vadd.f32 0.0, %v672
  %v674 = vpop.f32.mrb[0].mxu0
  %675 = vmatprep.mubr.bf16.mxu0 0
  %676 = vmatmul.mubr.bf16.gmra.mrb[0].mxu0 %v377
  %v677 = vpop.f32.mrb[0].mxu0
  %v678 = vadd.f32 0.0, %v677
  %v679 = vpop.f32.mrb[0].mxu0
  %v680 = vpop.f32.mrb[0].mxu0
  %v681 = vadd.f32 0.0, %v680
  %v682 = vpop.f32.mrb[0].mxu0
  %683 = vmatprep.mubr.bf16.mxu0 0
  %684 = vmatmul.mubr.bf16.gmra.mrb[0].mxu0 %v378
  %v685 = vpop.f32.mrb[0].mxu0
  %v686 = vadd.f32 0.0, %v685
  %v687 = vpop.f32.mrb[0].mxu0
  %v688 = vpop.f32.mrb[0].mxu0
  %v689 = vadd.f32 0.0, %v688
  %v690 = vpop.f32.mrb[0].mxu0
  %691 = vmatprep.mubr.bf16.mxu0 0
  %692 = vmatmul.mubr.bf16.gmra.mrb[0].mxu0 %v379
  %v693 = vpop.f32.mrb[0].mxu0
  %v694 = vadd.f32 0.0, %v693
  %v695 = vpop.f32.mrb[0].mxu0
  %v696 = vpop.f32.mrb[0].mxu0
  %v697 = vadd.f32 0.0, %v696
  %v698 = vpop.f32.mrb[0].mxu0
  %699 = vmatprep.mubr.bf16.mxu0 0
  %700 = vmatmul.mubr.bf16.gmra.mrb[0].mxu0 %v380
  %v701 = vpop.f32.mrb[0].mxu0
  %v702 = vadd.f32 0.0, %v701
  %v703 = vpop.f32.mrb[0].mxu0
  %v704 = vpop.f32.mrb[0].mxu0
  %v705 = vadd.f32 0.0, %v704
  %v706 = vpop.f32.mrb[0].mxu0
  %707 = vmatprep.mubr.bf16.mxu0 0
  %708 = vmatmul.mubr.bf16.gmra.mrb[0].mxu0 %v381
  %v709 = vpop.f32.mrb[0].mxu0
  %v710 = vadd.f32 0.0, %v709
  %v711 = vpop.f32.mrb[0].mxu0
  %v712 = vpop.f32.mrb[0].mxu0
  %v713 = vadd.f32 0.0, %v712
  %v714 = vpop.f32.mrb[0].mxu0
  %715 = vmatprep.mubr.bf16.mxu0 0
  %716 = vmatmul.mubr.bf16.gmra.mrb[0].mxu0 %v382
  %v717 = vpop.f32.mrb[0].mxu0
  %v718 = vadd.f32 0.0, %v717
  %v719 = vpop.f32.mrb[0].mxu0
  %v720 = vpop.f32.mrb[0].mxu0
  %v721 = vadd.f32 0.0, %v720
  %v722 = vpop.f32.mrb[0].mxu0
  %723 = vmatprep.mubr.bf16.mxu0 0
  %724 = vmatmul.mubr.bf16.gmra.mrb[0].mxu0 %v383
  %v725 = vpop.f32.mrb[0].mxu0
  %v726 = vadd.f32 0.0, %v725
  %v727 = vpop.f32.mrb[0].mxu0
  %v728 = vpop.f32.mrb[0].mxu0
  %v729 = vadd.f32 0.0, %v728
  %v730 = vpop.f32.mrb[0].mxu0
  %731 = vmatprep.mubr.bf16.mxu0 0
  %732 = vmatmul.mubr.bf16.gmra.mrb[0].mxu0 %v384
  %v733 = vpop.f32.mrb[0].mxu0
  %v734 = vadd.f32 0.0, %v733
  %v735 = vpop.f32.mrb[0].mxu0
  %v736 = vpop.f32.mrb[0].mxu0
  %v737 = vadd.f32 0.0, %v736
  %v738 = vpop.f32.mrb[0].mxu0
  %739 = vmatprep.mubr.bf16.mxu0 0
  %740 = vmatmul.mubr.bf16.gmra.mrb[0].mxu0 %v385
  %v741 = vpop.f32.mrb[0].mxu0
  %v742 = vadd.f32 0.0, %v741
  %v743 = vpop.f32.mrb[0].mxu0
  %v744 = vpop.f32.mrb[0].mxu0
  %v745 = vadd.f32 0.0, %v744
  %v746 = vpop.f32.mrb[0].mxu0
  %747 = vmatprep.mubr.bf16.mxu0 0
  %748 = vmatmul.mubr.bf16.gmra.mrb[0].mxu0 %v386
  %v749 = vpop.f32.mrb[0].mxu0
  %v750 = vadd.f32 0.0, %v749
  %v751 = vpop.f32.mrb[0].mxu0
  %v752 = vpop.f32.mrb[0].mxu0
  %v753 = vadd.f32 0.0, %v752
  %v754 = vpop.f32.mrb[0].mxu0
  %755 = vdwg.mxu0
  %v756 = vadd.f32 %v83, %v502
  %v757 = vadd.f32 %v84, %v505
  %v758 = vadd.f32 %v85, %v510
  %v759 = vadd.f32 %v86, %v513
  %v760 = vadd.f32 %v87, %v518
  %v761 = vadd.f32 %v88, %v521
  %v762 = vadd.f32 %v89, %v526
  %v763 = vadd.f32 %v90, %v529
  %v764 = vadd.f32 %v91, %v534
  %v765 = vadd.f32 %v92, %v537
  %v766 = vadd.f32 %v93, %v542
  %v767 = vadd.f32 %v94, %v545
  %v768 = vadd.f32 %v95, %v550
  %v769 = vadd.f32 %v96, %v553
  %v770 = vadd.f32 %v97, %v558
  %v771 = vadd.f32 %v98, %v561
  %v772 = vadd.f32 %v99, %v566
  %v773 = vadd.f32 %v100, %v569
  %v774 = vadd.f32 %v101, %v574
  %v775 = vadd.f32 %v102, %v577
  %v776 = vadd.f32 %v103, %v582
  %v777 = vadd.f32 %v104, %v585
  %v778 = vadd.f32 %v105, %v590
  %v779 = vadd.f32 %v106, %v593
  %v780 = vadd.f32 %v107, %v598
  %v781 = vadd.f32 %v108, %v601
  %v782 = vadd.f32 %v109, %v606
  %v783 = vadd.f32 %v110, %v609
  %v784 = vadd.f32 %v111, %v614
  %v785 = vadd.f32 %v112, %v617
  %v786 = vadd.f32 %v113, %v622
  %v787 = vadd.f32 %v114, %v625
  %v788 = vadd.f32 %v115, %v630
  %v789 = vadd.f32 %v116, %v633
  %v790 = vadd.f32 %v117, %v638
  %v791 = vadd.f32 %v118, %v641
  %v792 = vadd.f32 %v119, %v646
  %v793 = vadd.f32 %v120, %v649
  %v794 = vadd.f32 %v121, %v654
  %v795 = vadd.f32 %v122, %v657
  %v796 = vadd.f32 %v123, %v662
  %v797 = vadd.f32 %v124, %v665
  %v798 = vadd.f32 %v125, %v670
  %v799 = vadd.f32 %v126, %v673
  %v800 = vadd.f32 %v127, %v678
  %v801 = vadd.f32 %v128, %v681
  %v802 = vadd.f32 %v129, %v686
  %v803 = vadd.f32 %v130, %v689
  %v804 = vadd.f32 %v131, %v694
  %v805 = vadd.f32 %v132, %v697
  %v806 = vadd.f32 %v133, %v702
  %v807 = vadd.f32 %v134, %v705
  %v808 = vadd.f32 %v135, %v710
  %v809 = vadd.f32 %v136, %v713
  %v810 = vadd.f32 %v137, %v718
  %v811 = vadd.f32 %v138, %v721
  %v812 = vadd.f32 %v139, %v726
  %v813 = vadd.f32 %v140, %v729
  %v814 = vadd.f32 %v141, %v734
  %v815 = vadd.f32 %v142, %v737
  %v816 = vadd.f32 %v143, %v742
  %v817 = vadd.f32 %v144, %v745
  %v818 = vadd.f32 %v145, %v750
  %v819 = vadd.f32 %v146, %v753
  %820 = vst [vmem:[#allocation2] sm:$0xff] %v756
  %821 = vst [vmem:[#allocation2 + $0x8] sm:$0xff] %v757
  %822 = vst [vmem:[#allocation2 + $0x10] sm:$0xff] %v758
  %823 = vst [vmem:[#allocation2 + $0x18] sm:$0xff] %v759
  %824 = vst [vmem:[#allocation2 + $0x20] sm:$0xff] %v760
  %825 = vst [vmem:[#allocation2 + $0x28] sm:$0xff] %v761
  %826 = vst [vmem:[#allocation2 + $0x30] sm:$0xff] %v762
  %827 = vst [vmem:[#allocation2 + $0x38] sm:$0xff] %v763
  %828 = vst [vmem:[#allocation2 + $0x40] sm:$0xff] %v764
  %829 = vst [vmem:[#allocation2 + $0x48] sm:$0xff] %v765
  %830 = vst [vmem:[#allocation2 + $0x50] sm:$0xff] %v766
  %831 = vst [vmem:[#allocation2 + $0x58] sm:$0xff] %v767
  %832 = vst [vmem:[#allocation2 + $0x60] sm:$0xff] %v768
  %833 = vst [vmem:[#allocation2 + $0x68] sm:$0xff] %v769
  %834 = vst [vmem:[#allocation2 + $0x70] sm:$0xff] %v770
  %835 = vst [vmem:[#allocation2 + $0x78] sm:$0xff] %v771
  %836 = vst [vmem:[#allocation2 + $0x80] sm:$0xff] %v772
  %837 = vst [vmem:[#allocation2 + $0x88] sm:$0xff] %v773
  %838 = vst [vmem:[#allocation2 + $0x90] sm:$0xff] %v774
  %839 = vst [vmem:[#allocation2 + $0x98] sm:$0xff] %v775
  %840 = vst [vmem:[#allocation2 + $0xa0] sm:$0xff] %v776
  %841 = vst [vmem:[#allocation2 + $0xa8] sm:$0xff] %v777
  %842 = vst [vmem:[#allocation2 + $0xb0] sm:$0xff] %v778
  %843 = vst [vmem:[#allocation2 + $0xb8] sm:$0xff] %v779
  %844 = vst [vmem:[#allocation2 + $0xc0] sm:$0xff] %v780
  %845 = vst [vmem:[#allocation2 + $0xc8] sm:$0xff] %v781
  %846 = vst [vmem:[#allocation2 + $0xd0] sm:$0xff] %v782
  %847 = vst [vmem:[#allocation2 + $0xd8] sm:$0xff] %v783
  %848 = vst [vmem:[#allocation2 + $0xe0] sm:$0xff] %v784
  %849 = vst [vmem:[#allocation2 + $0xe8] sm:$0xff] %v785
  %850 = vst [vmem:[#allocation2 + $0xf0] sm:$0xff] %v786
  %851 = vst [vmem:[#allocation2 + $0xf8] sm:$0xff] %v787
  %852 = vst [vmem:[#allocation2 + $0x100] sm:$0xff] %v788
  %853 = vst [vmem:[#allocation2 + $0x108] sm:$0xff] %v789
  %854 = vst [vmem:[#allocation2 + $0x110] sm:$0xff] %v790
  %855 = vst [vmem:[#allocation2 + $0x118] sm:$0xff] %v791
  %856 = vst [vmem:[#allocation2 + $0x120] sm:$0xff] %v792
  %857 = vst [vmem:[#allocation2 + $0x128] sm:$0xff] %v793
  %858 = vst [vmem:[#allocation2 + $0x130] sm:$0xff] %v794
  %859 = vst [vmem:[#allocation2 + $0x138] sm:$0xff] %v795
  %860 = vst [vmem:[#allocation2 + $0x140] sm:$0xff] %v796
  %861 = vst [vmem:[#allocation2 + $0x148] sm:$0xff] %v797
  %862 = vst [vmem:[#allocation2 + $0x150] sm:$0xff] %v798
  %863 = vst [vmem:[#allocation2 + $0x158] sm:$0xff] %v799
  %864 = vst [vmem:[#allocation2 + $0x160] sm:$0xff] %v800
  %865 = vst [vmem:[#allocation2 + $0x168] sm:$0xff] %v801
  %866 = vst [vmem:[#allocation2 + $0x170] sm:$0xff] %v802
  %867 = vst [vmem:[#allocation2 + $0x178] sm:$0xff] %v803
  %868 = vst [vmem:[#allocation2 + $0x180] sm:$0xff] %v804
  %869 = vst [vmem:[#allocation2 + $0x188] sm:$0xff] %v805
  %870 = vst [vmem:[#allocation2 + $0x190] sm:$0xff] %v806
  %871 = vst [vmem:[#allocation2 + $0x198] sm:$0xff] %v807
  %872 = vst [vmem:[#allocation2 + $0x1a0] sm:$0xff] %v808
  %873 = vst [vmem:[#allocation2 + $0x1a8] sm:$0xff] %v809
  %874 = vst [vmem:[#allocation2 + $0x1b0] sm:$0xff] %v810
  %875 = vst [vmem:[#allocation2 + $0x1b8] sm:$0xff] %v811
  %876 = vst [vmem:[#allocation2 + $0x1c0] sm:$0xff] %v812
  %877 = vst [vmem:[#allocation2 + $0x1c8] sm:$0xff] %v813
  %878 = vst [vmem:[#allocation2 + $0x1d0] sm:$0xff] %v814
  %879 = vst [vmem:[#allocation2 + $0x1d8] sm:$0xff] %v815
  %880 = vst [vmem:[#allocation2 + $0x1e0] sm:$0xff] %v816
  %881 = vst [vmem:[#allocation2 + $0x1e8] sm:$0xff] %v817
  %882 = vst [vmem:[#allocation2 + $0x1f0] sm:$0xff] %v818
  %883 = vst [vmem:[#allocation2 + $0x1f8] sm:$0xff] %v819
  // Predicated region
  $region14: #{_lambda_.2} parent=0 // pred_check
    %p884 = pneg %p15
  $region15: #{_lambda_.2} parent=0 // pred_check_branch
    %886 = sbr.rel (%p884) target = $region17
  $region16: #{_lambda_.2} parent=0 // pred_region
    %v887 = vld [vmem:[#allocation2] sm:$0xff]
    %v888 = vld [vmem:[#allocation2 + $0x8] sm:$0xff]
    %v889 = vld [vmem:[#allocation2 + $0x10] sm:$0xff]
    %v890 = vld [vmem:[#allocation2 + $0x18] sm:$0xff]
    %v891 = vld [vmem:[#allocation2 + $0x20] sm:$0xff]
    %v892 = vld [vmem:[#allocation2 + $0x28] sm:$0xff]
    %v893 = vld [vmem:[#allocation2 + $0x30] sm:$0xff]
    %v894 = vld [vmem:[#allocation2 + $0x38] sm:$0xff]
    %v895 = vld [vmem:[#allocation2 + $0x40] sm:$0xff]
    %v896 = vld [vmem:[#allocation2 + $0x48] sm:$0xff]
    %v897 = vld [vmem:[#allocation2 + $0x50] sm:$0xff]
    %v898 = vld [vmem:[#allocation2 + $0x58] sm:$0xff]
    %v899 = vld [vmem:[#allocation2 + $0x60] sm:$0xff]
    %v900 = vld [vmem:[#allocation2 + $0x68] sm:$0xff]
    %v901 = vld [vmem:[#allocation2 + $0x70] sm:$0xff]
    %v902 = vld [vmem:[#allocation2 + $0x78] sm:$0xff]
    %v903 = vld [vmem:[#allocation2 + $0x80] sm:$0xff]
    %v904 = vld [vmem:[#allocation2 + $0x88] sm:$0xff]
    %v905 = vld [vmem:[#allocation2 + $0x90] sm:$0xff]
    %v906 = vld [vmem:[#allocation2 + $0x98] sm:$0xff]
    %v907 = vld [vmem:[#allocation2 + $0xa0] sm:$0xff]
    %v908 = vld [vmem:[#allocation2 + $0xa8] sm:$0xff]
    %v909 = vld [vmem:[#allocation2 + $0xb0] sm:$0xff]
    %v910 = vld [vmem:[#allocation2 + $0xb8] sm:$0xff]
    %v911 = vld [vmem:[#allocation2 + $0xc0] sm:$0xff]
    %v912 = vld [vmem:[#allocation2 + $0xc8] sm:$0xff]
    %v913 = vld [vmem:[#allocation2 + $0xd0] sm:$0xff]
    %v914 = vld [vmem:[#allocation2 + $0xd8] sm:$0xff]
    %v915 = vld [vmem:[#allocation2 + $0xe0] sm:$0xff]
    %v916 = vld [vmem:[#allocation2 + $0xe8] sm:$0xff]
    %v917 = vld [vmem:[#allocation2 + $0xf0] sm:$0xff]
    %v918 = vld [vmem:[#allocation2 + $0xf8] sm:$0xff]
    %v919 = vld [vmem:[#allocation2 + $0x100] sm:$0xff]
    %v920 = vld [vmem:[#allocation2 + $0x108] sm:$0xff]
    %v921 = vld [vmem:[#allocation2 + $0x110] sm:$0xff]
    %v922 = vld [vmem:[#allocation2 + $0x118] sm:$0xff]
    %v923 = vld [vmem:[#allocation2 + $0x120] sm:$0xff]
    %v924 = vld [vmem:[#allocation2 + $0x128] sm:$0xff]
    %v925 = vld [vmem:[#allocation2 + $0x130] sm:$0xff]
    %v926 = vld [vmem:[#allocation2 + $0x138] sm:$0xff]
    %v927 = vld [vmem:[#allocation2 + $0x140] sm:$0xff]
    %v928 = vld [vmem:[#allocation2 + $0x148] sm:$0xff]
    %v929 = vld [vmem:[#allocation2 + $0x150] sm:$0xff]
    %v930 = vld [vmem:[#allocation2 + $0x158] sm:$0xff]
    %v931 = vld [vmem:[#allocation2 + $0x160] sm:$0xff]
    %v932 = vld [vmem:[#allocation2 + $0x168] sm:$0xff]
    %v933 = vld [vmem:[#allocation2 + $0x170] sm:$0xff]
    %v934 = vld [vmem:[#allocation2 + $0x178] sm:$0xff]
    %v935 = vld [vmem:[#allocation2 + $0x180] sm:$0xff]
    %v936 = vld [vmem:[#allocation2 + $0x188] sm:$0xff]
    %v937 = vld [vmem:[#allocation2 + $0x190] sm:$0xff]
    %v938 = vld [vmem:[#allocation2 + $0x198] sm:$0xff]
    %v939 = vld [vmem:[#allocation2 + $0x1a0] sm:$0xff]
    %v940 = vld [vmem:[#allocation2 + $0x1a8] sm:$0xff]
    %v941 = vld [vmem:[#allocation2 + $0x1b0] sm:$0xff]
    %v942 = vld [vmem:[#allocation2 + $0x1b8] sm:$0xff]
    %v943 = vld [vmem:[#allocation2 + $0x1c0] sm:$0xff]
    %v944 = vld [vmem:[#allocation2 + $0x1c8] sm:$0xff]
    %v945 = vld [vmem:[#allocation2 + $0x1d0] sm:$0xff]
    %v946 = vld [vmem:[#allocation2 + $0x1d8] sm:$0xff]
    %v947 = vld [vmem:[#allocation2 + $0x1e0] sm:$0xff]
    %v948 = vld [vmem:[#allocation2 + $0x1e8] sm:$0xff]
    %v949 = vld [vmem:[#allocation2 + $0x1f0] sm:$0xff]
    %v950 = vld [vmem:[#allocation2 + $0x1f8] sm:$0xff]
    %v951 = vpack.c.bf16 %v888, %v887
    %v952 = vpack.c.bf16 %v890, %v889
    %v953 = vpack.c.bf16 %v892, %v891
    %v954 = vpack.c.bf16 %v894, %v893
    %v955 = vpack.c.bf16 %v896, %v895
    %v956 = vpack.c.bf16 %v898, %v897
    %v957 = vpack.c.bf16 %v900, %v899
    %v958 = vpack.c.bf16 %v902, %v901
    %v959 = vpack.c.bf16 %v904, %v903
    %v960 = vpack.c.bf16 %v906, %v905
    %v961 = vpack.c.bf16 %v908, %v907
    %v962 = vpack.c.bf16 %v910, %v909
    %v963 = vpack.c.bf16 %v912, %v911
    %v964 = vpack.c.bf16 %v914, %v913
    %v965 = vpack.c.bf16 %v916, %v915
    %v966 = vpack.c.bf16 %v918, %v917
    %v967 = vpack.c.bf16 %v920, %v919
    %v968 = vpack.c.bf16 %v922, %v921
    %v969 = vpack.c.bf16 %v924, %v923
    %v970 = vpack.c.bf16 %v926, %v925
    %v971 = vpack.c.bf16 %v928, %v927
    %v972 = vpack.c.bf16 %v930, %v929
    %v973 = vpack.c.bf16 %v932, %v931
    %v974 = vpack.c.bf16 %v934, %v933
    %v975 = vpack.c.bf16 %v936, %v935
    %v976 = vpack.c.bf16 %v938, %v937
    %v977 = vpack.c.bf16 %v940, %v939
    %v978 = vpack.c.bf16 %v942, %v941
    %v979 = vpack.c.bf16 %v944, %v943
    %v980 = vpack.c.bf16 %v946, %v945
    %v981 = vpack.c.bf16 %v948, %v947
    %v982 = vpack.c.bf16 %v950, %v949
    %v1015 = vunpack.c.l.b16 %v951
    %v1016 = vunpack.c.h.b16 %v951
    %v1017 = vunpack.c.l.b16 %v952
    %v1018 = vunpack.c.h.b16 %v952
    %v1019 = vunpack.c.l.b16 %v953
    %v1020 = vunpack.c.h.b16 %v953
    %v1021 = vunpack.c.l.b16 %v954
    %v1022 = vunpack.c.h.b16 %v954
    %v1023 = vunpack.c.l.b16 %v955
    %v1024 = vunpack.c.h.b16 %v955
    %v1025 = vunpack.c.l.b16 %v956
    %v1026 = vunpack.c.h.b16 %v956
    %v1027 = vunpack.c.l.b16 %v957
    %v1028 = vunpack.c.h.b16 %v957
    %v1029 = vunpack.c.l.b16 %v958
    %v1030 = vunpack.c.h.b16 %v958
    %v1031 = vunpack.c.l.b16 %v959
    %v1032 = vunpack.c.h.b16 %v959
    %v1033 = vunpack.c.l.b16 %v960
    %v1034 = vunpack.c.h.b16 %v960
    %v1035 = vunpack.c.l.b16 %v961
    %v1036 = vunpack.c.h.b16 %v961
    %v1037 = vunpack.c.l.b16 %v962
    %v1038 = vunpack.c.h.b16 %v962
    %v1039 = vunpack.c.l.b16 %v963
    %v1040 = vunpack.c.h.b16 %v963
    %v1041 = vunpack.c.l.b16 %v964
    %v1042 = vunpack.c.h.b16 %v964
    %v1043 = vunpack.c.l.b16 %v965
    %v1044 = vunpack.c.h.b16 %v965
    %v1045 = vunpack.c.l.b16 %v966
    %v1046 = vunpack.c.h.b16 %v966
    %v1047 = vunpack.c.l.b16 %v967
    %v1048 = vunpack.c.h.b16 %v967
    %v1049 = vunpack.c.l.b16 %v968
    %v1050 = vunpack.c.h.b16 %v968
    %v1051 = vunpack.c.l.b16 %v969
    %v1052 = vunpack.c.h.b16 %v969
    %v1053 = vunpack.c.l.b16 %v970
    %v1054 = vunpack.c.h.b16 %v970
    %v1055 = vunpack.c.l.b16 %v971
    %v1056 = vunpack.c.h.b16 %v971
    %v1057 = vunpack.c.l.b16 %v972
    %v1058 = vunpack.c.h.b16 %v972
    %v1059 = vunpack.c.l.b16 %v973
    %v1060 = vunpack.c.h.b16 %v973
    %v1061 = vunpack.c.l.b16 %v974
    %v1062 = vunpack.c.h.b16 %v974
    %v1063 = vunpack.c.l.b16 %v975
    %v1064 = vunpack.c.h.b16 %v975
    %v1065 = vunpack.c.l.b16 %v976
    %v1066 = vunpack.c.h.b16 %v976
    %v1067 = vunpack.c.l.b16 %v977
    %v1068 = vunpack.c.h.b16 %v977
    %v1069 = vunpack.c.l.b16 %v978
    %v1070 = vunpack.c.h.b16 %v978
    %v1071 = vunpack.c.l.b16 %v979
    %v1072 = vunpack.c.h.b16 %v979
    %v1073 = vunpack.c.l.b16 %v980
    %v1074 = vunpack.c.h.b16 %v980
    %v1075 = vunpack.c.l.b16 %v981
    %v1076 = vunpack.c.h.b16 %v981
    %v1077 = vunpack.c.l.b16 %v982
    %v1078 = vunpack.c.h.b16 %v982
    %v1079 = vpack.c.b16 %v1015, %v1015
    %v1080 = vpack.c.b16 %v1016, %v1016
    %v1081 = vpack.c.b16 %v1017, %v1017
    %v1082 = vpack.c.b16 %v1018, %v1018
    %v1083 = vpack.c.b16 %v1019, %v1019
    %v1084 = vpack.c.b16 %v1020, %v1020
    %v1085 = vpack.c.b16 %v1021, %v1021
    %v1086 = vpack.c.b16 %v1022, %v1022
    %v1087 = vpack.c.b16 %v1023, %v1023
    %v1088 = vpack.c.b16 %v1024, %v1024
    %v1089 = vpack.c.b16 %v1025, %v1025
    %v1090 = vpack.c.b16 %v1026, %v1026
    %v1091 = vpack.c.b16 %v1027, %v1027
    %v1092 = vpack.c.b16 %v1028, %v1028
    %v1093 = vpack.c.b16 %v1029, %v1029
    %v1094 = vpack.c.b16 %v1030, %v1030
    %v1095 = vpack.c.b16 %v1031, %v1031
    %v1096 = vpack.c.b16 %v1032, %v1032
    %v1097 = vpack.c.b16 %v1033, %v1033
    %v1098 = vpack.c.b16 %v1034, %v1034
    %v1099 = vpack.c.b16 %v1035, %v1035
    %v1100 = vpack.c.b16 %v1036, %v1036
    %v1101 = vpack.c.b16 %v1037, %v1037
    %v1102 = vpack.c.b16 %v1038, %v1038
    %v1103 = vpack.c.b16 %v1039, %v1039
    %v1104 = vpack.c.b16 %v1040, %v1040
    %v1105 = vpack.c.b16 %v1041, %v1041
    %v1106 = vpack.c.b16 %v1042, %v1042
    %v1107 = vpack.c.b16 %v1043, %v1043
    %v1108 = vpack.c.b16 %v1044, %v1044
    %v1109 = vpack.c.b16 %v1045, %v1045
    %v1110 = vpack.c.b16 %v1046, %v1046
    %v1111 = vpack.c.b16 %v1047, %v1047
    %v1112 = vpack.c.b16 %v1048, %v1048
    %v1113 = vpack.c.b16 %v1049, %v1049
    %v1114 = vpack.c.b16 %v1050, %v1050
    %v1115 = vpack.c.b16 %v1051, %v1051
    %v1116 = vpack.c.b16 %v1052, %v1052
    %v1117 = vpack.c.b16 %v1053, %v1053
    %v1118 = vpack.c.b16 %v1054, %v1054
    %v1119 = vpack.c.b16 %v1055, %v1055
    %v1120 = vpack.c.b16 %v1056, %v1056
    %v1121 = vpack.c.b16 %v1057, %v1057
    %v1122 = vpack.c.b16 %v1058, %v1058
    %v1123 = vpack.c.b16 %v1059, %v1059
    %v1124 = vpack.c.b16 %v1060, %v1060
    %v1125 = vpack.c.b16 %v1061, %v1061
    %v1126 = vpack.c.b16 %v1062, %v1062
    %v1127 = vpack.c.b16 %v1063, %v1063
    %v1128 = vpack.c.b16 %v1064, %v1064
    %v1129 = vpack.c.b16 %v1065, %v1065
    %v1130 = vpack.c.b16 %v1066, %v1066
    %v1131 = vpack.c.b16 %v1067, %v1067
    %v1132 = vpack.c.b16 %v1068, %v1068
    %v1133 = vpack.c.b16 %v1069, %v1069
    %v1134 = vpack.c.b16 %v1070, %v1070
    %v1135 = vpack.c.b16 %v1071, %v1071
    %v1136 = vpack.c.b16 %v1072, %v1072
    %v1137 = vpack.c.b16 %v1073, %v1073
    %v1138 = vpack.c.b16 %v1074, %v1074
    %v1139 = vpack.c.b16 %v1075, %v1075
    %v1140 = vpack.c.b16 %v1076, %v1076
    %v1141 = vpack.c.b16 %v1077, %v1077
    %v1142 = vpack.c.b16 %v1078, %v1078
    %1207 = vst [vmem:[%s2] sm:$0xf] %v1079
    %1208 = vst [vmem:[%s2 + $0x4] sm:$0xf] %v1080
    %1209 = vst [vmem:[%s2 + $0x8] sm:$0xf] %v1081
    %1210 = vst [vmem:[%s2 + $0xc] sm:$0xf] %v1082
    %1211 = vst [vmem:[%s2 + $0x10] sm:$0xf] %v1083
    %1212 = vst [vmem:[%s2 + $0x14] sm:$0xf] %v1084
    %1213 = vst [vmem:[%s2 + $0x18] sm:$0xf] %v1085
    %1214 = vst [vmem:[%s2 + $0x1c] sm:$0xf] %v1086
    %1215 = vst [vmem:[%s2 + $0x20] sm:$0xf] %v1087
    %1216 = vst [vmem:[%s2 + $0x24] sm:$0xf] %v1088
    %1217 = vst [vmem:[%s2 + $0x28] sm:$0xf] %v1089
    %1218 = vst [vmem:[%s2 + $0x2c] sm:$0xf] %v1090
    %1219 = vst [vmem:[%s2 + $0x30] sm:$0xf] %v1091
    %1220 = vst [vmem:[%s2 + $0x34] sm:$0xf] %v1092
    %1221 = vst [vmem:[%s2 + $0x38] sm:$0xf] %v1093
    %1222 = vst [vmem:[%s2 + $0x3c] sm:$0xf] %v1094
    %1223 = vst [vmem:[%s2 + $0x40] sm:$0xf] %v1095
    %1224 = vst [vmem:[%s2 + $0x44] sm:$0xf] %v1096
    %1225 = vst [vmem:[%s2 + $0x48] sm:$0xf] %v1097
    %1226 = vst [vmem:[%s2 + $0x4c] sm:$0xf] %v1098
    %1227 = vst [vmem:[%s2 + $0x50] sm:$0xf] %v1099
    %1228 = vst [vmem:[%s2 + $0x54] sm:$0xf] %v1100
    %1229 = vst [vmem:[%s2 + $0x58] sm:$0xf] %v1101
    %1230 = vst [vmem:[%s2 + $0x5c] sm:$0xf] %v1102
    %1231 = vst [vmem:[%s2 + $0x60] sm:$0xf] %v1103
    %1232 = vst [vmem:[%s2 + $0x64] sm:$0xf] %v1104
    %1233 = vst [vmem:[%s2 + $0x68] sm:$0xf] %v1105
    %1234 = vst [vmem:[%s2 + $0x6c] sm:$0xf] %v1106
    %1235 = vst [vmem:[%s2 + $0x70] sm:$0xf] %v1107
    %1236 = vst [vmem:[%s2 + $0x74] sm:$0xf] %v1108
    %1237 = vst [vmem:[%s2 + $0x78] sm:$0xf] %v1109
    %1238 = vst [vmem:[%s2 + $0x7c] sm:$0xf] %v1110
    %1239 = vst [vmem:[%s2 + $0x80] sm:$0xf] %v1111
    %1240 = vst [vmem:[%s2 + $0x84] sm:$0xf] %v1112
    %1241 = vst [vmem:[%s2 + $0x88] sm:$0xf] %v1113
    %1242 = vst [vmem:[%s2 + $0x8c] sm:$0xf] %v1114
    %1243 = vst [vmem:[%s2 + $0x90] sm:$0xf] %v1115
    %1244 = vst [vmem:[%s2 + $0x94] sm:$0xf] %v1116
    %1245 = vst [vmem:[%s2 + $0x98] sm:$0xf] %v1117
    %1246 = vst [vmem:[%s2 + $0x9c] sm:$0xf] %v1118
    %1247 = vst [vmem:[%s2 + $0xa0] sm:$0xf] %v1119
    %1248 = vst [vmem:[%s2 + $0xa4] sm:$0xf] %v1120
    %1249 = vst [vmem:[%s2 + $0xa8] sm:$0xf] %v1121
    %1250 = vst [vmem:[%s2 + $0xac] sm:$0xf] %v1122
    %1251 = vst [vmem:[%s2 + $0xb0] sm:$0xf] %v1123
    %1252 = vst [vmem:[%s2 + $0xb4] sm:$0xf] %v1124
    %1253 = vst [vmem:[%s2 + $0xb8] sm:$0xf] %v1125
    %1254 = vst [vmem:[%s2 + $0xbc] sm:$0xf] %v1126
    %1255 = vst [vmem:[%s2 + $0xc0] sm:$0xf] %v1127
    %1256 = vst [vmem:[%s2 + $0xc4] sm:$0xf] %v1128
    %1257 = vst [vmem:[%s2 + $0xc8] sm:$0xf] %v1129
    %1258 = vst [vmem:[%s2 + $0xcc] sm:$0xf] %v1130
    %1259 = vst [vmem:[%s2 + $0xd0] sm:$0xf] %v1131
    %1260 = vst [vmem:[%s2 + $0xd4] sm:$0xf] %v1132
    %1261 = vst [vmem:[%s2 + $0xd8] sm:$0xf] %v1133
    %1262 = vst [vmem:[%s2 + $0xdc] sm:$0xf] %v1134
    %1263 = vst [vmem:[%s2 + $0xe0] sm:$0xf] %v1135
    %1264 = vst [vmem:[%s2 + $0xe4] sm:$0xf] %v1136
    %1265 = vst [vmem:[%s2 + $0xe8] sm:$0xf] %v1137
    %1266 = vst [vmem:[%s2 + $0xec] sm:$0xf] %v1138
    %1267 = vst [vmem:[%s2 + $0xf0] sm:$0xf] %v1139
    %1268 = vst [vmem:[%s2 + $0xf4] sm:$0xf] %v1140
    %1269 = vst [vmem:[%s2 + $0xf8] sm:$0xf] %v1141
    %1270 = vst [vmem:[%s2 + $0xfc] sm:$0xf] %v1142
    %v1271 = vadd.f32 %v887, %v888
    %v1272 = vadd.f32 %v1271, %v889
    %v1273 = vadd.f32 %v1272, %v890
    %v1274 = vadd.f32 %v1273, %v891
    %v1275 = vadd.f32 %v1274, %v892
    %v1276 = vadd.f32 %v1275, %v893
    %v1277 = vadd.f32 %v1276, %v894
    %v1278 = vadd.f32 %v1277, %v895
    %v1279 = vadd.f32 %v1278, %v896
    %v1280 = vadd.f32 %v1279, %v897
    %v1281 = vadd.f32 %v1280, %v898
    %v1282 = vadd.f32 %v1281, %v899
    %v1283 = vadd.f32 %v1282, %v900
    %v1284 = vadd.f32 %v1283, %v901
    %v1285 = vadd.f32 %v1284, %v902
    %v1286 = vadd.f32 %v1285, %v903
    %v1287 = vadd.f32 %v1286, %v904
    %v1288 = vadd.f32 %v1287, %v905
    %v1289 = vadd.f32 %v1288, %v906
    %v1290 = vadd.f32 %v1289, %v907
    %v1291 = vadd.f32 %v1290, %v908
    %v1292 = vadd.f32 %v1291, %v909
    %v1293 = vadd.f32 %v1292, %v910
    %v1294 = vadd.f32 %v1293, %v911
    %v1295 = vadd.f32 %v1294, %v912
    %v1296 = vadd.f32 %v1295, %v913
    %v1297 = vadd.f32 %v1296, %v914
    %v1298 = vadd.f32 %v1297, %v915
    %v1299 = vadd.f32 %v1298, %v916
    %v1300 = vadd.f32 %v1299, %v917
    %v1301 = vadd.f32 %v1300, %v918
    %v1302 = vadd.f32 %v1301, %v919
    %v1303 = vadd.f32 %v1302, %v920
    %v1304 = vadd.f32 %v1303, %v921
    %v1305 = vadd.f32 %v1304, %v922
    %v1306 = vadd.f32 %v1305, %v923
    %v1307 = vadd.f32 %v1306, %v924
    %v1308 = vadd.f32 %v1307, %v925
    %v1309 = vadd.f32 %v1308, %v926
    %v1310 = vadd.f32 %v1309, %v927
    %v1311 = vadd.f32 %v1310, %v928
    %v1312 = vadd.f32 %v1311, %v929
    %v1313 = vadd.f32 %v1312, %v930
    %v1314 = vadd.f32 %v1313, %v931
    %v1315 = vadd.f32 %v1314, %v932
    %v1316 = vadd.f32 %v1315, %v933
    %v1317 = vadd.f32 %v1316, %v934
    %v1318 = vadd.f32 %v1317, %v935
    %v1319 = vadd.f32 %v1318, %v936
    %v1320 = vadd.f32 %v1319, %v937
    %v1321 = vadd.f32 %v1320, %v938
    %v1322 = vadd.f32 %v1321, %v939
    %v1323 = vadd.f32 %v1322, %v940
    %v1324 = vadd.f32 %v1323, %v941
    %v1325 = vadd.f32 %v1324, %v942
    %v1326 = vadd.f32 %v1325, %v943
    %v1327 = vadd.f32 %v1326, %v944
    %v1328 = vadd.f32 %v1327, %v945
    %v1329 = vadd.f32 %v1328, %v946
    %v1330 = vadd.f32 %v1329, %v947
    %v1331 = vadd.f32 %v1330, %v948
    %v1332 = vadd.f32 %v1331, %v949
    %v1333 = vadd.f32 %v1332, %v950
    %v1334 = vrot.slane %v1333, 4
    %v1335 = vadd.f32 %v1333, %v1334
    %v1336 = vrot.slane %v1335, 2
    %v1337 = vadd.f32 %v1335, %v1336
    %v1338 = vrot.slane %v1337, 1
    %v1339 = vadd.f32 %v1337, %v1338
    %1340 = vst [vmem:[%s3] sm:$0x1] %v1339
    %v1341 = vmul.f32 %v887, %v887
    %v1342 = vmul.f32 %v888, %v888
    %v1343 = vmul.f32 %v889, %v889
    %v1344 = vmul.f32 %v890, %v890
    %v1345 = vmul.f32 %v891, %v891
    %v1346 = vmul.f32 %v892, %v892
    %v1347 = vmul.f32 %v893, %v893
    %v1348 = vmul.f32 %v894, %v894
    %v1349 = vmul.f32 %v895, %v895
    %v1350 = vmul.f32 %v896, %v896
    %v1351 = vmul.f32 %v897, %v897
    %v1352 = vmul.f32 %v898, %v898
    %v1353 = vmul.f32 %v899, %v899
    %v1354 = vmul.f32 %v900, %v900
    %v1355 = vmul.f32 %v901, %v901
    %v1356 = vmul.f32 %v902, %v902
    %v1357 = vmul.f32 %v903, %v903
    %v1358 = vmul.f32 %v904, %v904
    %v1359 = vmul.f32 %v905, %v905
    %v1360 = vmul.f32 %v906, %v906
    %v1361 = vmul.f32 %v907, %v907
    %v1362 = vmul.f32 %v908, %v908
    %v1363 = vmul.f32 %v909, %v909
    %v1364 = vmul.f32 %v910, %v910
    %v1365 = vmul.f32 %v911, %v911
    %v1366 = vmul.f32 %v912, %v912
    %v1367 = vmul.f32 %v913, %v913
    %v1368 = vmul.f32 %v914, %v914
    %v1369 = vmul.f32 %v915, %v915
    %v1370 = vmul.f32 %v916, %v916
    %v1371 = vmul.f32 %v917, %v917
    %v1372 = vmul.f32 %v918, %v918
    %v1373 = vmul.f32 %v919, %v919
    %v1374 = vmul.f32 %v920, %v920
    %v1375 = vmul.f32 %v921, %v921
    %v1376 = vmul.f32 %v922, %v922
    %v1377 = vmul.f32 %v923, %v923
    %v1378 = vmul.f32 %v924, %v924
    %v1379 = vmul.f32 %v925, %v925
    %v1380 = vmul.f32 %v926, %v926
    %v1381 = vmul.f32 %v927, %v927
    %v1382 = vmul.f32 %v928, %v928
    %v1383 = vmul.f32 %v929, %v929
    %v1384 = vmul.f32 %v930, %v930
    %v1385 = vmul.f32 %v931, %v931
    %v1386 = vmul.f32 %v932, %v932
    %v1387 = vmul.f32 %v933, %v933
    %v1388 = vmul.f32 %v934, %v934
    %v1389 = vmul.f32 %v935, %v935
    %v1390 = vmul.f32 %v936, %v936
    %v1391 = vmul.f32 %v937, %v937
    %v1392 = vmul.f32 %v938, %v938
    %v1393 = vmul.f32 %v939, %v939
    %v1394 = vmul.f32 %v940, %v940
    %v1395 = vmul.f32 %v941, %v941
    %v1396 = vmul.f32 %v942, %v942
    %v1397 = vmul.f32 %v943, %v943
    %v1398 = vmul.f32 %v944, %v944
    %v1399 = vmul.f32 %v945, %v945
    %v1400 = vmul.f32 %v946, %v946
    %v1401 = vmul.f32 %v947, %v947
    %v1402 = vmul.f32 %v948, %v948
    %v1403 = vmul.f32 %v949, %v949
    %v1404 = vmul.f32 %v950, %v950
    %v1405 = vadd.f32 %v1341, %v1342
    %v1406 = vadd.f32 %v1405, %v1343
    %v1407 = vadd.f32 %v1406, %v1344
    %v1408 = vadd.f32 %v1407, %v1345
    %v1409 = vadd.f32 %v1408, %v1346
    %v1410 = vadd.f32 %v1409, %v1347
    %v1411 = vadd.f32 %v1410, %v1348
    %v1412 = vadd.f32 %v1411, %v1349
    %v1413 = vadd.f32 %v1412, %v1350
    %v1414 = vadd.f32 %v1413, %v1351
    %v1415 = vadd.f32 %v1414, %v1352
    %v1416 = vadd.f32 %v1415, %v1353
    %v1417 = vadd.f32 %v1416, %v1354
    %v1418 = vadd.f32 %v1417, %v1355
    %v1419 = vadd.f32 %v1418, %v1356
    %v1420 = vadd.f32 %v1419, %v1357
    %v1421 = vadd.f32 %v1420, %v1358
    %v1422 = vadd.f32 %v1421, %v1359
    %v1423 = vadd.f32 %v1422, %v1360
    %v1424 = vadd.f32 %v1423, %v1361
    %v1425 = vadd.f32 %v1424, %v1362
    %v1426 = vadd.f32 %v1425, %v1363
    %v1427 = vadd.f32 %v1426, %v1364
    %v1428 = vadd.f32 %v1427, %v1365
    %v1429 = vadd.f32 %v1428, %v1366
    %v1430 = vadd.f32 %v1429, %v1367
    %v1431 = vadd.f32 %v1430, %v1368
    %v1432 = vadd.f32 %v1431, %v1369
    %v1433 = vadd.f32 %v1432, %v1370
    %v1434 = vadd.f32 %v1433, %v1371
    %v1435 = vadd.f32 %v1434, %v1372
    %v1436 = vadd.f32 %v1435, %v1373
    %v1437 = vadd.f32 %v1436, %v1374
    %v1438 = vadd.f32 %v1437, %v1375
    %v1439 = vadd.f32 %v1438, %v1376
    %v1440 = vadd.f32 %v1439, %v1377
    %v1441 = vadd.f32 %v1440, %v1378
    %v1442 = vadd.f32 %v1441, %v1379
    %v1443 = vadd.f32 %v1442, %v1380
    %v1444 = vadd.f32 %v1443, %v1381
    %v1445 = vadd.f32 %v1444, %v1382
    %v1446 = vadd.f32 %v1445, %v1383
    %v1447 = vadd.f32 %v1446, %v1384
    %v1448 = vadd.f32 %v1447, %v1385
    %v1449 = vadd.f32 %v1448, %v1386
    %v1450 = vadd.f32 %v1449, %v1387
    %v1451 = vadd.f32 %v1450, %v1388
    %v1452 = vadd.f32 %v1451, %v1389
    %v1453 = vadd.f32 %v1452, %v1390
    %v1454 = vadd.f32 %v1453, %v1391
    %v1455 = vadd.f32 %v1454, %v1392
    %v1456 = vadd.f32 %v1455, %v1393
    %v1457 = vadd.f32 %v1456, %v1394
    %v1458 = vadd.f32 %v1457, %v1395
    %v1459 = vadd.f32 %v1458, %v1396
    %v1460 = vadd.f32 %v1459, %v1397
    %v1461 = vadd.f32 %v1460, %v1398
    %v1462 = vadd.f32 %v1461, %v1399
    %v1463 = vadd.f32 %v1462, %v1400
    %v1464 = vadd.f32 %v1463, %v1401
    %v1465 = vadd.f32 %v1464, %v1402
    %v1466 = vadd.f32 %v1465, %v1403
    %v1467 = vadd.f32 %v1466, %v1404
    %v1468 = vrot.slane %v1467, 4
    %v1469 = vadd.f32 %v1467, %v1468
    %v1470 = vrot.slane %v1469, 2
    %v1471 = vadd.f32 %v1469, %v1470
    %v1472 = vrot.slane %v1471, 1
    %v1473 = vadd.f32 %v1471, %v1472
    %1474 = vst [vmem:[%s4] sm:$0x1] %v1473
  $region17: #{_lambda_.2} parent=0 // pred_fallthru
    _
  // Predicated region
  $region18: #{_lambda_.2} parent=0 // pred_check
    _
  $region19: #{_lambda_.2} parent=0 // pred_check_branch
    %1476 = sbr.rel (0) target = $region21
  $region20: #{_lambda_.2} parent=0 // pred_region
    _
  $region21: #{_lambda_.2} parent=0 // pred_fallthru
    _
  // Predicated region
  $region22: #{_lambda_.2} parent=0 // pred_check
    _
  $region23: #{_lambda_.2} parent=0 // pred_check_branch
    %1478 = sbr.rel (0) target = $region25
  $region24: #{_lambda_.2} parent=0 // pred_region
    _
  $region25: #{_lambda_.2} parent=0 // pred_fallthru
    _
  // Predicated region
  $region26: #{_lambda_.2} parent=0 // pred_check
    _
  $region27: #{_lambda_.2} parent=0 // pred_check_branch
    %1480 = sbr.rel (0) target = $region29
  $region28: #{_lambda_.2} parent=0 // pred_region
    _
  $region29: #{_lambda_.2} parent=0 // pred_fallthru
    _
  // Predicated region
  $region30: #{_lambda_.2} parent=0 // pred_check
    _
  $region31: #{_lambda_.2} parent=0 // pred_check_branch
    %1482 = sbr.rel (0) target = $region33
  $region32: #{_lambda_.2} parent=0 // pred_region
    _
  $region33: #{_lambda_.2} parent=0 // pred_fallthru
    _
  // Predicated region
  $region34: #{_lambda_.2} parent=0 // pred_check
    _
  $region35: #{_lambda_.2} parent=0 // pred_check_branch
    %1484 = sbr.rel (0) target = $region37
  $region36: #{_lambda_.2} parent=0 // pred_region
    _
  $region37: #{_lambda_.2} parent=0 // pred_fallthru
    _
  // Predicated region
  $region38: #{_lambda_.2} parent=0 // pred_check
    _
  $region39: #{_lambda_.2} parent=0 // pred_check_branch
    %1486 = sbr.rel (0) target = $region41
  $region40: #{_lambda_.2} parent=0 // pred_region
    _
  $region41: #{_lambda_.2} parent=0 // pred_fallthru
    _

</llo_original>
